<compile_context>
chip_gen: v6e
topology: v6e:2x2x1
jax: 0.10.0
libtpu: 0.0.40
codegen_flags: <defaults>
</compile_context>

<pallas_src>
import functools
import math

import jax
import jax.numpy as jnp
from jax import lax
from jax.experimental import pallas as pl
from jax.experimental.pallas import tpu as pltpu


def _round_up(x, m):
    return (x + m - 1) // m * m


# ---------------------------------------------------------------------------
# Fused kernel: (TM, K) x (K, C) matmul + bias [+ residual] [+ ReLU]
# ---------------------------------------------------------------------------
def _make_matmul_kernel(relu: bool, with_residual: bool):
    if with_residual:
        def kernel(x_ref, w_ref, b_ref, r_ref, o_ref):
            y = jnp.dot(x_ref[...], w_ref[...], preferred_element_type=jnp.float32)
            y = y + b_ref[...] + r_ref[...]
            if relu:
                y = jnp.maximum(y, 0.0)
            o_ref[...] = y
    else:
        def kernel(x_ref, w_ref, b_ref, o_ref):
            y = jnp.dot(x_ref[...], w_ref[...], preferred_element_type=jnp.float32)
            y = y + b_ref[...]
            if relu:
                y = jnp.maximum(y, 0.0)
            o_ref[...] = y
    return kernel


def fused_matmul(patches, w_mat, bias, *, residual=None, relu=True, tm=512):
    """relu(patches @ w_mat + bias [+ residual]); returns (M, C) f32.

    patches: (M, K), w_mat: (K, C) (BN scale already folded in), bias: (C,).
    M is tiled by `tm`; K and C are zero-padded to multiples of 128.
    """
    M, K = patches.shape
    _, C = w_mat.shape
    Kp = _round_up(K, 128)
    Cp = _round_up(C, 128)
    tm = max(128, min(tm, _round_up(M, 128)))
    Mp = _round_up(M, tm)

    # bf16 operands (f32 accumulation happens inside the kernel).
    x_p = jnp.pad(patches.astype(jnp.bfloat16), ((0, Mp - M), (0, Kp - K)))
    w_p = jnp.pad(w_mat.astype(jnp.bfloat16), ((0, Kp - K), (0, Cp - C)))
    b_p = jnp.pad(bias.astype(jnp.float32).reshape(1, C), ((0, 0), (0, Cp - C)))

    args = [x_p, w_p, b_p]
    in_specs = [
        pl.BlockSpec((tm, Kp), lambda i: (i, 0)),
        pl.BlockSpec((Kp, Cp), lambda i: (0, 0)),
        pl.BlockSpec((1, Cp), lambda i: (0, 0)),
    ]
    if residual is not None:
        r_p = jnp.pad(residual.astype(jnp.float32), ((0, Mp - M), (0, Cp - C)))
        args.append(r_p)
        in_specs.append(pl.BlockSpec((tm, Cp), lambda i: (i, 0)))

    out = pl.pallas_call(
        _make_matmul_kernel(relu, residual is not None),
        out_shape=jax.ShapeDtypeStruct((Mp, Cp), jnp.float32),
        grid=(Mp // tm,),
        in_specs=in_specs,
        out_specs=pl.BlockSpec((tm, Cp), lambda i: (i, 0)),
        compiler_params=pltpu.CompilerParams(dimension_semantics=("parallel",)),
    )(*args)
    return out[:M, :C]


# ---------------------------------------------------------------------------
# Wrapper glue: BN folding, SamePad2d, im2col, layout.
# ---------------------------------------------------------------------------
def _fold_bn_cols(w_mat, conv_b, gamma, beta, mean, var, eps=1e-3):
    """Fold eval-mode BN into a (K, Cout) weight matrix and a (Cout,) bias."""
    s = gamma / jnp.sqrt(var + eps)
    return w_mat * s[None, :], (conv_b - mean) * s + beta


def _same_pad_2d(x_nhwc, kernel_size, stride):
    """pytorch_utils.SamePad2d: TF-style SAME zero padding."""
    _, H, W, _ = x_nhwc.shape
    out_h = math.ceil(H / stride)
    out_w = math.ceil(W / stride)
    pad_h = max((out_h - 1) * stride + kernel_size - H, 0)
    pad_w = max((out_w - 1) * stride + kernel_size - W, 0)
    top, left = pad_h // 2, pad_w // 2
    return jnp.pad(x_nhwc, ((0, 0), (top, pad_h - top), (left, pad_w - left), (0, 0)))


def _im2col3x3(x_nhwc):
    """3x3 stride-1 valid patches, tap-major / channel-minor K ordering."""
    # TODO(synk): the im2col stays wrapper-side (9x activation bytes in HBM);
    #             an in-kernel row-tap accumulation would remove that round-trip.
    N, H, W, C = x_nhwc.shape
    Ho, Wo = H - 2, W - 2
    taps = [x_nhwc[:, dh:dh + Ho, dw:dw + Wo, :] for dh in range(3) for dw in range(3)]
    patches = jnp.concatenate(taps, axis=-1)                # (N, Ho, Wo, 9*C)
    return patches.reshape(N * Ho * Wo, 9 * C), (N, Ho, Wo)


def _w3x3_to_mat(w_oihw):
    """OIHW (Cout, Cin, 3, 3) -> (9*Cin, Cout) matching _im2col3x3's K ordering."""
    cout, cin = w_oihw.shape[0], w_oihw.shape[1]
    return jnp.transpose(w_oihw, (2, 3, 1, 0)).reshape(9 * cin, cout)


def bottleneck_forward(x, params, *, stride=1, tm=512):
    """Bottleneck forward.  x: NCHW f32 -> NCHW f32."""
    N, Cin, H, W = x.shape
    xh = jnp.transpose(x, (0, 2, 3, 1))                     # NHWC

    # ---- conv1 (1x1, stride) + BN1 + ReLU ----
    x1 = xh[:, ::stride, ::stride, :]
    N1, H1, W1, _ = x1.shape
    planes = params["conv1_w"].shape[0]
    w1 = params["conv1_w"].reshape(planes, Cin).T           # (Cin, planes)
    w1f, b1f = _fold_bn_cols(w1, params["conv1_b"], params["bn1_gamma"],
                             params["bn1_beta"], params["bn1_mean"], params["bn1_var"])
    y1 = fused_matmul(x1.reshape(N1 * H1 * W1, Cin), w1f, b1f, relu=True, tm=tm)
    y1 = y1.reshape(N1, H1, W1, planes)

    # ---- SamePad2d(3, 1) + conv2 (3x3) + BN2 + ReLU ----
    p2, (n2, h2, w2sp) = _im2col3x3(_same_pad_2d(y1, 3, 1))
    w2f, b2f = _fold_bn_cols(_w3x3_to_mat(params["conv2_w"]), params["conv2_b"],
                             params["bn2_gamma"], params["bn2_beta"],
                             params["bn2_mean"], params["bn2_var"])
    y2 = fused_matmul(p2, w2f, b2f, relu=True, tm=tm).reshape(n2, h2, w2sp, planes)

    # ---- residual path (downsample = 3x3 no-pad conv + BN, supplied) ----
    if "down_conv_w" in params:
        pd, _ = _im2col3x3(xh)
        c_out = params["down_conv_w"].shape[0]
        wdf, bdf = _fold_bn_cols(_w3x3_to_mat(params["down_conv_w"]), params["down_conv_b"],
                                 params["down_bn_gamma"], params["down_bn_beta"],
                                 params["down_bn_mean"], params["down_bn_var"])
        residual = fused_matmul(pd, wdf, bdf, relu=False, tm=tm)
    else:
        # TODO(synk): with downsample=None the reference's `output += residual`
        #             is shape-inconsistent (conv3 is 3x3 without padding), so an
        #             identity residual cannot be expressed; supply a downsample.
        raise ValueError("Bottleneck requires a shape-compatible downsample projection.")

    # ---- conv3 (3x3, NO padding) + BN3 + residual add + ReLU (fused) ----
    p3, (n3, h3, w3sp) = _im2col3x3(y2)
    c_out = params["conv3_w"].shape[0]
    w3f, b3f = _fold_bn_cols(_w3x3_to_mat(params["conv3_w"]), params["conv3_b"],
                             params["bn3_gamma"], params["bn3_beta"],
                             params["bn3_mean"], params["bn3_var"])
    out = fused_matmul(p3, w3f, b3f, residual=residual, relu=True, tm=tm)
    out = out.reshape(n3, h3, w3sp, c_out)
    return jnp.transpose(out, (0, 3, 1, 2))                 # back to NCHW


# ---------------------------------------------------------------------------
# Pure-JAX reference (lax.conv path, same bf16 operand quantization) — used
# only to validate the Pallas kernels in the harness.
# ---------------------------------------------------------------------------
def _fold_bn_oihw(w, b, gamma, beta, mean, var, eps=1e-3):
    s = gamma / jnp.sqrt(var + eps)
    return w * s[:, None, None, None], (b - mean) * s + beta


def _ref_conv(x_nhwc, w_oihw, bias, stride=1):
    w_hwio = jnp.transpose(w_oihw, (2, 3, 1, 0)).astype(jnp.bfloat16)
    y = lax.conv_general_dilated(
        x_nhwc.astype(jnp.bfloat16), w_hwio, window_strides=(stride, stride),
        padding=[(0, 0), (0, 0)], dimension_numbers=("NHWC", "HWIO", "NHWC"),
        preferred_element_type=jnp.float32)
    return y + bias.reshape(1, 1, 1, -1)


def bottleneck_reference(x, params, stride=1):
    xh = jnp.transpose(x, (0, 2, 3, 1))
    w1, b1 = _fold_bn_oihw(params["conv1_w"], params["conv1_b"], params["bn1_gamma"],
                           params["bn1_beta"], params["bn1_mean"], params["bn1_var"])
    y = jax.nn.relu(_ref_conv(xh, w1, b1, stride=stride))
    y = _same_pad_2d(y, 3, 1)
    w2, b2 = _fold_bn_oihw(params["conv2_w"], params["conv2_b"], params["bn2_gamma"],
                           params["bn2_beta"], params["bn2_mean"], params["bn2_var"])
    y = jax.nn.relu(_ref_conv(y, w2, b2))
    w3, b3 = _fold_bn_oihw(params["conv3_w"], params["conv3_b"], params["bn3_gamma"],
                           params["bn3_beta"], params["bn3_mean"], params["bn3_var"])
    y = _ref_conv(y, w3, b3)
    wd, bd = _fold_bn_oihw(params["down_conv_w"], params["down_conv_b"], params["down_bn_gamma"],
                           params["down_bn_beta"], params["down_bn_mean"], params["down_bn_var"])
    r = _ref_conv(xh, wd, bd)
    return jnp.transpose(jax.nn.relu(y + r), (0, 3, 1, 2))


# ---------------------------------------------------------------------------
# Deterministic parameter init (shapes from the module __init__).
# ---------------------------------------------------------------------------
def init_params(key, inplanes, planes, expansion=4):
    c4 = planes * expansion
    keys = iter(jax.random.split(key, 32))

    def conv(o, i, k):
        fan = i * k * k
        return jax.random.normal(next(keys), (o, i, k, k), jnp.float32) / math.sqrt(fan)

    def vec(c, scale=0.1):
        return scale * jax.random.normal(next(keys), (c,), jnp.float32)

    def bn(c):
        return (1.0 + vec(c), vec(c), vec(c),
                jax.random.uniform(next(keys), (c,), jnp.float32, minval=0.5, maxval=1.5))

    p = {}
    p["conv1_w"], p["conv1_b"] = conv(planes, inplanes, 1), vec(planes)
    p["bn1_gamma"], p["bn1_beta"], p["bn1_mean"], p["bn1_var"] = bn(planes)
    p["conv2_w"], p["conv2_b"] = conv(planes, planes, 3), vec(planes)
    p["bn2_gamma"], p["bn2_beta"], p["bn2_mean"], p["bn2_var"] = bn(planes)
    p["conv3_w"], p["conv3_b"] = conv(c4, planes, 3), vec(c4)
    p["bn3_gamma"], p["bn3_beta"], p["bn3_mean"], p["bn3_var"] = bn(c4)
    # Downsample projection (3x3, no pad) so the residual matches conv3's output.
    p["down_conv_w"], p["down_conv_b"] = conv(c4, inplanes, 3), vec(c4)
    p["down_bn_gamma"], p["down_bn_beta"], p["down_bn_mean"], p["down_bn_var"] = bn(c4)
    return p


if __name__ == "__main__":
    key = jax.random.PRNGKey(0)
    kx, kp = jax.random.split(key)
    inplanes, planes = 64, 16                       # expansion=4 -> 64 output channels
    x = jax.random.normal(kx, (2, inplanes, 16, 16), jnp.float32)
    params = init_params(kp, inplanes, planes)

    # tm=128 so the tiny example exercises the multi-tile (pipelined) grid path.
    fwd = jax.jit(functools.partial(bottleneck_forward, stride=1, tm=128))
    out = jax.block_until_ready(fwd(x, params))

    # conv1 (1x1) keeps 16x16; SamePad+conv2 keeps 16x16; conv3 (3x3, no pad) -> 14x14
    assert out.shape == (2, planes * 4, 14, 14), out.shape
    assert bool(jnp.all(jnp.isfinite(out)))

    ref = jax.block_until_ready(bottleneck_reference(x, params, stride=1))
    max_err = float(jnp.max(jnp.abs(out - ref)))
    assert max_err < 5e-2, f"max abs err vs reference: {max_err}"

    print("KERNEL_OK")
</pallas_src>

<mosaic_0001>
module attributes {stable_mosaic.version = 11 : i64} {
  func.func @kernel(%arg0: i32, %arg1: memref<128x128xbf16, #tpu.memory_space<vmem>>, %arg2: memref<128x128xbf16, #tpu.memory_space<vmem>>, %arg3: memref<1x128xf32, #tpu.memory_space<vmem>>, %arg4: memref<128x128xf32, #tpu.memory_space<vmem>>) attributes {dimension_semantics = [#tpu.dimension_semantics<parallel>], iteration_bounds = array<i64: 4>, scalar_prefetch = 0 : i64, scratch_operands = 0 : i64, tpu.core_type = #tpu.core_type<tc>, window_params = [{transform_indices = @transform_0, window_bounds = array<i64: 128, 128>}, {pipeline_mode = #tpu.pipeline_mode<synchronous>, transform_indices = @transform_1, window_bounds = array<i64: 128, 128>}, {pipeline_mode = #tpu.pipeline_mode<synchronous>, transform_indices = @transform_2, window_bounds = array<i64: 1, 128>}, {transform_indices = @transform_3, window_bounds = array<i64: 128, 128>}]} {
    %c0 = arith.constant 0 : index
    %c0_0 = arith.constant 0 : index
    %0 = vector.load %arg1[%c0, %c0_0] : memref<128x128xbf16, #tpu.memory_space<vmem>>, vector<128x128xbf16>
    %c0_1 = arith.constant 0 : index
    %c0_2 = arith.constant 0 : index
    %1 = vector.load %arg2[%c0_1, %c0_2] : memref<128x128xbf16, #tpu.memory_space<vmem>>, vector<128x128xbf16>
    %cst = arith.constant dense<0.000000e+00> : vector<128x128xf32>
    %2 = tpu.matmul %0, %1, %cst {dimension_numbers = #tpu.dot_dimension_numbers<[1], [0], [0], [1], [0, 0, 1, 1], [], []>} : vector<128x128xbf16>, vector<128x128xbf16>, vector<128x128xf32> -> vector<128x128xf32>
    %c0_3 = arith.constant 0 : index
    %c0_4 = arith.constant 0 : index
    %3 = vector.load %arg3[%c0_3, %c0_4] : memref<1x128xf32, #tpu.memory_space<vmem>>, vector<1x128xf32>
    %4 = vector.broadcast %3 : vector<1x128xf32> to vector<128x128xf32>
    %5 = arith.addf %2, %4 : vector<128x128xf32>
    %cst_5 = arith.constant 0.000000e+00 : f32
    %6 = vector.broadcast %cst_5 : f32 to vector<128x128xf32>
    %7 = arith.maximumf %5, %6 : vector<128x128xf32>
    %c0_6 = arith.constant 0 : index
    %c0_7 = arith.constant 0 : index
    %8 = vector.load %arg4[%c0_6, %c0_7] : memref<128x128xf32, #tpu.memory_space<vmem>>, vector<128x128xf32>
    tpu.vector_store %arg4[%c0_6, %c0_7], %7 {strides = array<i32>} : memref<128x128xf32, #tpu.memory_space<vmem>>, vector<128x128xf32>,
    return
  }
  func.func @transform_0(%arg0: i32) -> (i32, i32) {
    %c0_i32 = arith.constant 0 : i32
    %c0_i32_0 = arith.constant 0 : i32
    return %arg0, %c0_i32 : i32, i32
  }
  func.func @transform_1(%arg0: i32) -> (i32, i32) {
    %c0_i32 = arith.constant 0 : i32
    %c0_i32_0 = arith.constant 0 : i32
    %c0_i32_1 = arith.constant 0 : i32
    return %c0_i32, %c0_i32_0 : i32, i32
  }
  func.func @transform_2(%arg0: i32) -> (i32, i32) {
    %c0_i32 = arith.constant 0 : i32
    %c0_i32_0 = arith.constant 0 : i32
    %c0_i32_1 = arith.constant 0 : i32
    return %c0_i32, %c0_i32_0 : i32, i32
  }
  func.func @transform_3(%arg0: i32) -> (i32, i32) {
    %c0_i32 = arith.constant 0 : i32
    %c0_i32_0 = arith.constant 0 : i32
    return %arg0, %c0_i32 : i32, i32
  }
}

module attributes {stable_mosaic.version = 11 : i64} {
  func.func @kernel(%arg0: i32, %arg1: memref<128x256xbf16, #tpu.memory_space<vmem>>, %arg2: memref<256x128xbf16, #tpu.memory_space<vmem>>, %arg3: memref<1x128xf32, #tpu.memory_space<vmem>>, %arg4: memref<128x128xf32, #tpu.memory_space<vmem>>) attributes {dimension_semantics = [#tpu.dimension_semantics<parallel>], iteration_bounds = array<i64: 4>, scalar_prefetch = 0 : i64, scratch_operands = 0 : i64, tpu.core_type = #tpu.core_type<tc>, window_params = [{transform_indices = @transform_0, window_bounds = array<i64: 128, 256>}, {pipeline_mode = #tpu.pipeline_mode<synchronous>, transform_indices = @transform_1, window_bounds = array<i64: 256, 128>}, {pipeline_mode = #tpu.pipeline_mode<synchronous>, transform_indices = @transform_2, window_bounds = array<i64: 1, 128>}, {transform_indices = @transform_3, window_bounds = array<i64: 128, 128>}]} {
    %c0 = arith.constant 0 : index
    %c0_0 = arith.constant 0 : index
    %0 = vector.load %arg1[%c0, %c0_0] : memref<128x256xbf16, #tpu.memory_space<vmem>>, vector<128x256xbf16>
    %c0_1 = arith.constant 0 : index
    %c0_2 = arith.constant 0 : index
    %1 = vector.load %arg2[%c0_1, %c0_2] : memref<256x128xbf16, #tpu.memory_space<vmem>>, vector<256x128xbf16>
    %cst = arith.constant dense<0.000000e+00> : vector<128x128xf32>
    %2 = tpu.matmul %0, %1, %cst {dimension_numbers = #tpu.dot_dimension_numbers<[1], [0], [0], [1], [0, 0, 1, 1], [], []>} : vector<128x256xbf16>, vector<256x128xbf16>, vector<128x128xf32> -> vector<128x128xf32>
    %c0_3 = arith.constant 0 : index
    %c0_4 = arith.constant 0 : index
    %3 = vector.load %arg3[%c0_3, %c0_4] : memref<1x128xf32, #tpu.memory_space<vmem>>, vector<1x128xf32>
    %4 = vector.broadcast %3 : vector<1x128xf32> to vector<128x128xf32>
    %5 = arith.addf %2, %4 : vector<128x128xf32>
    %cst_5 = arith.constant 0.000000e+00 : f32
    %6 = vector.broadcast %cst_5 : f32 to vector<128x128xf32>
    %7 = arith.maximumf %5, %6 : vector<128x128xf32>
    %c0_6 = arith.constant 0 : index
    %c0_7 = arith.constant 0 : index
    %8 = vector.load %arg4[%c0_6, %c0_7] : memref<128x128xf32, #tpu.memory_space<vmem>>, vector<128x128xf32>
    tpu.vector_store %arg4[%c0_6, %c0_7], %7 {strides = array<i32>} : memref<128x128xf32, #tpu.memory_space<vmem>>, vector<128x128xf32>,
    return
  }
  func.func @transform_0(%arg0: i32) -> (i32, i32) {
    %c0_i32 = arith.constant 0 : i32
    %c0_i32_0 = arith.constant 0 : i32
    return %arg0, %c0_i32 : i32, i32
  }
  func.func @transform_1(%arg0: i32) -> (i32, i32) {
    %c0_i32 = arith.constant 0 : i32
    %c0_i32_0 = arith.constant 0 : i32
    %c0_i32_1 = arith.constant 0 : i32
    return %c0_i32, %c0_i32_0 : i32, i32
  }
  func.func @transform_2(%arg0: i32) -> (i32, i32) {
    %c0_i32 = arith.constant 0 : i32
    %c0_i32_0 = arith.constant 0 : i32
    %c0_i32_1 = arith.constant 0 : i32
    return %c0_i32, %c0_i32_0 : i32, i32
  }
  func.func @transform_3(%arg0: i32) -> (i32, i32) {
    %c0_i32 = arith.constant 0 : i32
    %c0_i32_0 = arith.constant 0 : i32
    return %arg0, %c0_i32 : i32, i32
  }
}

module attributes {stable_mosaic.version = 11 : i64} {
  func.func @kernel(%arg0: i32, %arg1: memref<128x640xbf16, #tpu.memory_space<vmem>>, %arg2: memref<640x128xbf16, #tpu.memory_space<vmem>>, %arg3: memref<1x128xf32, #tpu.memory_space<vmem>>, %arg4: memref<128x128xf32, #tpu.memory_space<vmem>>) attributes {dimension_semantics = [#tpu.dimension_semantics<parallel>], iteration_bounds = array<i64: 4>, scalar_prefetch = 0 : i64, scratch_operands = 0 : i64, tpu.core_type = #tpu.core_type<tc>, window_params = [{transform_indices = @transform_0, window_bounds = array<i64: 128, 640>}, {pipeline_mode = #tpu.pipeline_mode<synchronous>, transform_indices = @transform_1, window_bounds = array<i64: 640, 128>}, {pipeline_mode = #tpu.pipeline_mode<synchronous>, transform_indices = @transform_2, window_bounds = array<i64: 1, 128>}, {transform_indices = @transform_3, window_bounds = array<i64: 128, 128>}]} {
    %c0 = arith.constant 0 : index
    %c0_0 = arith.constant 0 : index
    %0 = vector.load %arg1[%c0, %c0_0] : memref<128x640xbf16, #tpu.memory_space<vmem>>, vector<128x640xbf16>
    %c0_1 = arith.constant 0 : index
    %c0_2 = arith.constant 0 : index
    %1 = vector.load %arg2[%c0_1, %c0_2] : memref<640x128xbf16, #tpu.memory_space<vmem>>, vector<640x128xbf16>
    %cst = arith.constant dense<0.000000e+00> : vector<128x128xf32>
    %2 = tpu.matmul %0, %1, %cst {dimension_numbers = #tpu.dot_dimension_numbers<[1], [0], [0], [1], [0, 0, 1, 1], [], []>} : vector<128x640xbf16>, vector<640x128xbf16>, vector<128x128xf32> -> vector<128x128xf32>
    %c0_3 = arith.constant 0 : index
    %c0_4 = arith.constant 0 : index
    %3 = vector.load %arg3[%c0_3, %c0_4] : memref<1x128xf32, #tpu.memory_space<vmem>>, vector<1x128xf32>
    %4 = vector.broadcast %3 : vector<1x128xf32> to vector<128x128xf32>
    %5 = arith.addf %2, %4 : vector<128x128xf32>
    %c0_5 = arith.constant 0 : index
    %c0_6 = arith.constant 0 : index
    %6 = vector.load %arg4[%c0_5, %c0_6] : memref<128x128xf32, #tpu.memory_space<vmem>>, vector<128x128xf32>
    tpu.vector_store %arg4[%c0_5, %c0_6], %5 {strides = array<i32>} : memref<128x128xf32, #tpu.memory_space<vmem>>, vector<128x128xf32>,
    return
  }
  func.func @transform_0(%arg0: i32) -> (i32, i32) {
    %c0_i32 = arith.constant 0 : i32
    %c0_i32_0 = arith.constant 0 : i32
    return %arg0, %c0_i32 : i32, i32
  }
  func.func @transform_1(%arg0: i32) -> (i32, i32) {
    %c0_i32 = arith.constant 0 : i32
    %c0_i32_0 = arith.constant 0 : i32
    %c0_i32_1 = arith.constant 0 : i32
    return %c0_i32, %c0_i32_0 : i32, i32
  }
  func.func @transform_2(%arg0: i32) -> (i32, i32) {
    %c0_i32 = arith.constant 0 : i32
    %c0_i32_0 = arith.constant 0 : i32
    %c0_i32_1 = arith.constant 0 : i32
    return %c0_i32, %c0_i32_0 : i32, i32
  }
  func.func @transform_3(%arg0: i32) -> (i32, i32) {
    %c0_i32 = arith.constant 0 : i32
    %c0_i32_0 = arith.constant 0 : i32
    return %arg0, %c0_i32 : i32, i32
  }
}

module attributes {stable_mosaic.version = 11 : i64} {
  func.func @kernel(%arg0: i32, %arg1: memref<128x256xbf16, #tpu.memory_space<vmem>>, %arg2: memref<256x128xbf16, #tpu.memory_space<vmem>>, %arg3: memref<1x128xf32, #tpu.memory_space<vmem>>, %arg4: memref<128x128xf32, #tpu.memory_space<vmem>>, %arg5: memref<128x128xf32, #tpu.memory_space<vmem>>) attributes {dimension_semantics = [#tpu.dimension_semantics<parallel>], iteration_bounds = array<i64: 4>, scalar_prefetch = 0 : i64, scratch_operands = 0 : i64, tpu.core_type = #tpu.core_type<tc>, window_params = [{transform_indices = @transform_0, window_bounds = array<i64: 128, 256>}, {pipeline_mode = #tpu.pipeline_mode<synchronous>, transform_indices = @transform_1, window_bounds = array<i64: 256, 128>}, {pipeline_mode = #tpu.pipeline_mode<synchronous>, transform_indices = @transform_2, window_bounds = array<i64: 1, 128>}, {transform_indices = @transform_3, window_bounds = array<i64: 128, 128>}, {transform_indices = @transform_4, window_bounds = array<i64: 128, 128>}]} {
    %c0 = arith.constant 0 : index
    %c0_0 = arith.constant 0 : index
    %0 = vector.load %arg1[%c0, %c0_0] : memref<128x256xbf16, #tpu.memory_space<vmem>>, vector<128x256xbf16>
    %c0_1 = arith.constant 0 : index
    %c0_2 = arith.constant 0 : index
    %1 = vector.load %arg2[%c0_1, %c0_2] : memref<256x128xbf16, #tpu.memory_space<vmem>>, vector<256x128xbf16>
    %cst = arith.constant dense<0.000000e+00> : vector<128x128xf32>
    %2 = tpu.matmul %0, %1, %cst {dimension_numbers = #tpu.dot_dimension_numbers<[1], [0], [0], [1], [0, 0, 1, 1], [], []>} : vector<128x256xbf16>, vector<256x128xbf16>, vector<128x128xf32> -> vector<128x128xf32>
    %c0_3 = arith.constant 0 : index
    %c0_4 = arith.constant 0 : index
    %3 = vector.load %arg3[%c0_3, %c0_4] : memref<1x128xf32, #tpu.memory_space<vmem>>, vector<1x128xf32>
    %4 = vector.broadcast %3 : vector<1x128xf32> to vector<128x128xf32>
    %5 = arith.addf %2, %4 : vector<128x128xf32>
    %c0_5 = arith.constant 0 : index
    %c0_6 = arith.constant 0 : index
    %6 = vector.load %arg4[%c0_5, %c0_6] : memref<128x128xf32, #tpu.memory_space<vmem>>, vector<128x128xf32>
    %7 = arith.addf %5, %6 : vector<128x128xf32>
    %cst_7 = arith.constant 0.000000e+00 : f32
    %8 = vector.broadcast %cst_7 : f32 to vector<128x128xf32>
    %9 = arith.maximumf %7, %8 : vector<128x128xf32>
    %c0_8 = arith.constant 0 : index
    %c0_9 = arith.constant 0 : index
    %10 = vector.load %arg5[%c0_8, %c0_9] : memref<128x128xf32, #tpu.memory_space<vmem>>, vector<128x128xf32>
    tpu.vector_store %arg5[%c0_8, %c0_9], %9 {strides = array<i32>} : memref<128x128xf32, #tpu.memory_space<vmem>>, vector<128x128xf32>,
    return
  }
  func.func @transform_0(%arg0: i32) -> (i32, i32) {
    %c0_i32 = arith.constant 0 : i32
    %c0_i32_0 = arith.constant 0 : i32
    return %arg0, %c0_i32 : i32, i32
  }
  func.func @transform_1(%arg0: i32) -> (i32, i32) {
    %c0_i32 = arith.constant 0 : i32
    %c0_i32_0 = arith.constant 0 : i32
    %c0_i32_1 = arith.constant 0 : i32
    return %c0_i32, %c0_i32_0 : i32, i32
  }
  func.func @transform_2(%arg0: i32) -> (i32, i32) {
    %c0_i32 = arith.constant 0 : i32
    %c0_i32_0 = arith.constant 0 : i32
    %c0_i32_1 = arith.constant 0 : i32
    return %c0_i32, %c0_i32_0 : i32, i32
  }
  func.func @transform_3(%arg0: i32) -> (i32, i32) {
    %c0_i32 = arith.constant 0 : i32
    %c0_i32_0 = arith.constant 0 : i32
    return %arg0, %c0_i32 : i32, i32
  }
  func.func @transform_4(%arg0: i32) -> (i32, i32) {
    %c0_i32 = arith.constant 0 : i32
    %c0_i32_0 = arith.constant 0 : i32
    return %arg0, %c0_i32 : i32, i32
  }
}

</mosaic_0001>

<llo_original>
// kernel: bottleneck_forward.4
$region0: #{bottleneck_forward.4}
  #allocation0 [shape = 'u32[]', space=smem, size = 0x4, offset = 0x4, fixed_abs, tag = 'smem constant byte address 0x4 - core index']
  #allocation1 [shape = 'u32[144,128]{1,0:T(1,128)}', space=vmem, size = 0x12000, scoped, tag = 'internal scratch']
  %s0 = inlined_call_operand.vmem [shape: bf16[512,128], index: 0, kind: input, shape index: {}]
  %s1 = inlined_call_operand.vmem [shape: bf16[128,128], index: 1, kind: input, shape index: {}]
  %s2 = inlined_call_operand.vmem [shape: f32[1,128], index: 2, kind: input, shape index: {}]
  %s3 = inlined_call_operand.vmem [shape: f32[512,128], index: 3, kind: output, shape index: {}]
  %s4 = sld [smem:[#allocation0]]
  $region45: #{bottleneck_forward.4} parent=0
    _
  %s6 = ssub.s32 1, %s4
  %s7 = scalar_select 0, %s6, %s4
  loop: start=0, step=1, limit=6
  $region2: #{bottleneck_forward.4} parent=0 // loop_pre_header
    _
  $region3: #{bottleneck_forward.4} parent=0 // loop_header
    %s9 = sphi 0, %s13
    %p10 = scmp.ge.s32.totalorder %s9, 6
    %s19 = sphi 0, %s21
    %s22 = sphi 0, %s19
    %s23 = sphi 0, %s22
    %s39 = sphi 0, %s23
    %s43 = sphi 0, %s43
    %s45 = sphi 0, %s43
    %s46 = sphi 0, %s45
    %s60 = sphi 0, %s46
    %s64 = sphi 0, %s64
    %s66 = sphi 0, %s64
    %s67 = sphi 0, %s66
    %s81 = sphi 0, %s67
    %s87 = sphi 0, %s89
    %s90 = sphi 0, %s87
    %s91 = sphi 0, %s90
    %s107 = sphi 0, %s91
  $region4: #{bottleneck_forward.4} parent=0 // loop_header_branch
    %12 = sbr.rel (%p10) target = $region8
  $region5: #{bottleneck_forward.4} parent=0 // loop_body
    %s14 = ssub.s32 %s9, 1
    %s15 = ssub.s32 %s9, 2
    %s16 = sadd.s32 %s9, 1
    %s17 = ssub.s32 %s9, %s16
    %p18 = scmp.eq.s32.totalorder %s17, 0
    %s20 = sadd.s32 %s19, 1
    %s21 = scalar_select %p18, %s19, %s20
    %p24 = pneg %p18
    %p25 = scmp.eq.s32.totalorder %s9, 3
    %p26 = por %p24, %p25
    %p27 = scmp.ne.s32.totalorder %s19, %s22
    %p28 = scmp.eq.s32.totalorder %s9, 0
    %p29 = por %p27, %p28
    %p30 = scmp.ne.s32.totalorder %s19, %s22
    %p31 = scmp.eq.s32.totalorder %s14, 3
    %p32 = por %p30, %p31
    %p33 = scmp.ne.s32.totalorder %s22, %s23
    %p34 = scmp.eq.s32.totalorder %s14, 0
    %p35 = por %p33, %p34
    %p36 = scmp.ne.s32.totalorder %s22, %s23
    %p37 = scmp.eq.s32.totalorder %s15, 3
    %p38 = por %p36, %p37
    %p40 = scmp.ne.s32.totalorder %s23, %s39
    %p41 = scmp.eq.s32.totalorder %s15, 0
    %p42 = por %p40, %p41
    %s44 = sadd.s32 %s43, 1
    %p47 = scmp.eq.s32.totalorder %s9, 3
    %p48 = scmp.ne.s32.totalorder %s43, %s45
    %p49 = scmp.eq.s32.totalorder %s9, 0
    %p50 = por %p48, %p49
    %p51 = scmp.ne.s32.totalorder %s43, %s45
    %p52 = scmp.eq.s32.totalorder %s14, 3
    %p53 = por %p51, %p52
    %p54 = scmp.ne.s32.totalorder %s45, %s46
    %p55 = scmp.eq.s32.totalorder %s14, 0
    %p56 = por %p54, %p55
    %p57 = scmp.ne.s32.totalorder %s45, %s46
    %p58 = scmp.eq.s32.totalorder %s15, 3
    %p59 = por %p57, %p58
    %p61 = scmp.ne.s32.totalorder %s46, %s60
    %p62 = scmp.eq.s32.totalorder %s15, 0
    %p63 = por %p61, %p62
    %s65 = sadd.s32 %s64, 1
    %p68 = scmp.eq.s32.totalorder %s9, 3
    %p69 = scmp.ne.s32.totalorder %s64, %s66
    %p70 = scmp.eq.s32.totalorder %s9, 0
    %p71 = por %p69, %p70
    %p72 = scmp.ne.s32.totalorder %s64, %s66
    %p73 = scmp.eq.s32.totalorder %s14, 3
    %p74 = por %p72, %p73
    %p75 = scmp.ne.s32.totalorder %s66, %s67
    %p76 = scmp.eq.s32.totalorder %s14, 0
    %p77 = por %p75, %p76
    %p78 = scmp.ne.s32.totalorder %s66, %s67
    %p79 = scmp.eq.s32.totalorder %s15, 3
    %p80 = por %p78, %p79
    %p82 = scmp.ne.s32.totalorder %s67, %s81
    %p83 = scmp.eq.s32.totalorder %s15, 0
    %p84 = por %p82, %p83
    %s85 = ssub.s32 %s9, %s16
    %p86 = scmp.eq.s32.totalorder %s85, 0
    %s88 = sadd.s32 %s87, 1
    %s89 = scalar_select %p86, %s87, %s88
    %p92 = pneg %p86
    %p93 = scmp.eq.s32.totalorder %s9, 3
    %p94 = por %p92, %p93
    %p95 = scmp.ne.s32.totalorder %s87, %s90
    %p96 = scmp.eq.s32.totalorder %s9, 0
    %p97 = por %p95, %p96
    %p98 = scmp.ne.s32.totalorder %s87, %s90
    %p99 = scmp.eq.s32.totalorder %s14, 3
    %p100 = por %p98, %p99
    %p101 = scmp.ne.s32.totalorder %s90, %s91
    %p102 = scmp.eq.s32.totalorder %s14, 0
    %p103 = por %p101, %p102
    %p104 = scmp.ne.s32.totalorder %s90, %s91
    %p105 = scmp.eq.s32.totalorder %s15, 3
    %p106 = por %p104, %p105
    %p108 = scmp.ne.s32.totalorder %s91, %s107
    %p109 = scmp.eq.s32.totalorder %s15, 0
    %p110 = por %p108, %p109
    %p111 = scmp.le.s32.totalorder 1, %s9
    %p112 = scmp.lt.s32.totalorder %s9, 5
    %p113 = pnand %p111, %p112
    %p114 = pneg %p113
    // Predicated region
    $region9: #{bottleneck_forward.4} parent=5 // pred_check
      _
    $region10: #{bottleneck_forward.4} parent=5 // pred_check_branch
      %116 = sbr.rel (%p113) target = $region12
    $region11: #{bottleneck_forward.4} parent=5 // pred_region
      %s117 = ssub.s32 %s9, 1
      // Predicated region
      $region13: #{bottleneck_forward.4} parent=11 // pred_check
        %p118 = pneg %p56
      $region14: #{bottleneck_forward.4} parent=11 // pred_check_branch
        %120 = sbr.rel (%p118) target = $region16
      $region15: #{bottleneck_forward.4} parent=11 // pred_region
        _
      $region16: #{bottleneck_forward.4} parent=11 // pred_fallthru
        _
      // Predicated region
      $region17: #{bottleneck_forward.4} parent=11 // pred_check
        %p121 = pneg %p77
      $region18: #{bottleneck_forward.4} parent=11 // pred_check_branch
        %123 = sbr.rel (%p121) target = $region20
      $region19: #{bottleneck_forward.4} parent=11 // pred_region
        _
      $region20: #{bottleneck_forward.4} parent=11 // pred_fallthru
        _
    $region12: #{bottleneck_forward.4} parent=5 // pred_fallthru
      _
    %p124 = scmp.lt.s32.totalorder %s9, 4
    // Predicated region
    $region21: #{bottleneck_forward.4} parent=5 // pred_check
      %p125 = pneg %p124
    $region22: #{bottleneck_forward.4} parent=5 // pred_check_branch
      %127 = sbr.rel (%p125) target = $region24
    $region23: #{bottleneck_forward.4} parent=5 // pred_region
      // Predicated region
      $region25: #{bottleneck_forward.4} parent=23 // pred_check
        %p128 = pneg %p29
      $region26: #{bottleneck_forward.4} parent=23 // pred_check_branch
        %130 = sbr.rel (%p128) target = $region28
      $region27: #{bottleneck_forward.4} parent=23 // pred_region
        %s131 = smul.u32 16, %s9
        %p132 = scmp.lt.s32.totalorder %s131, 63
        %s133 = scalar_select %p132, %s131, 63
        %s134 = smul.addr %s133, 4
        %s135 = scalar_lea.vmem %s0, %s134
        %s136 = smul.u32 16, %s9
      $region28: #{bottleneck_forward.4} parent=23 // pred_fallthru
        _
    $region24: #{bottleneck_forward.4} parent=5 // pred_fallthru
      _
    %p137 = scmp.le.s32.totalorder 1, %s9
    %p138 = scmp.lt.s32.totalorder %s9, 5
    %p139 = pnand %p137, %p138
    %p140 = pneg %p139
    // Predicated region
    $region29: #{bottleneck_forward.4} parent=5 // pred_check
      _
    $region30: #{bottleneck_forward.4} parent=5 // pred_check_branch
      %142 = sbr.rel (%p139) target = $region32
    $region31: #{bottleneck_forward.4} parent=5 // pred_region
      %s143 = ssub.s32 %s9, 1
      %s144 = smul.u32 16, %s14
      %p145 = scmp.lt.s32.totalorder %s144, 63
      %s146 = scalar_select %p145, %s144, 63
      %s147 = smul.addr %s146, 4
      %s148 = scalar_lea.vmem %s0, %s147
      %p149 = pneg %p35
      %p150 = pneg %p32
      %p151 = pneg %p56
      %p152 = pneg %p53
      %p153 = pneg %p77
      %p154 = pneg %p74
      %p155 = pneg %p103
      %p156 = pneg %p100
      %s157 = smul.u32 16, %s14
      %p158 = scmp.lt.s32.totalorder %s157, 63
      %s159 = scalar_select %p158, %s157, 63
      %s160 = smul.addr %s159, 8
      %s161 = scalar_lea.vmem %s3, %s160
      %s162 = smul.u32 16, %s14
      %p163 = scmp.lt.s32.totalorder %s162, 63
      %s164 = scalar_select %p163, %s162, 63
      %s165 = smul.addr %s164, 4
      %s166 = scalar_lea.vmem %s0, %s165
      %s167 = smul.u32 16, %s14
      %s168 = smul.u32 16, %s14
      %p169 = scmp.lt.s32.totalorder %s168, 63
      %s170 = scalar_select %p169, %s168, 63
      %s171 = smul.addr %s170, 8
      %s172 = scalar_lea.vmem %s3, %s171
      %s173 = smul.u32 16, %s14
      %v175 = vld [vmem:[%s166] sm:$0xf]
      %v176 = vld [vmem:[%s166 + $0x4] sm:$0xf]
      %v177 = vld [vmem:[%s166 + $0x8] sm:$0xf]
      %v178 = vld [vmem:[%s166 + $0xc] sm:$0xf]
      %v179 = vld [vmem:[%s166 + $0x10] sm:$0xf]
      %v180 = vld [vmem:[%s166 + $0x14] sm:$0xf]
      %v181 = vld [vmem:[%s166 + $0x18] sm:$0xf]
      %v182 = vld [vmem:[%s166 + $0x1c] sm:$0xf]
      %v183 = vld [vmem:[%s166 + $0x20] sm:$0xf]
      %v184 = vld [vmem:[%s166 + $0x24] sm:$0xf]
      %v185 = vld [vmem:[%s166 + $0x28] sm:$0xf]
      %v186 = vld [vmem:[%s166 + $0x2c] sm:$0xf]
      %v187 = vld [vmem:[%s166 + $0x30] sm:$0xf]
      %v188 = vld [vmem:[%s166 + $0x34] sm:$0xf]
      %v189 = vld [vmem:[%s166 + $0x38] sm:$0xf]
      %v190 = vld [vmem:[%s166 + $0x3c] sm:$0xf]
      %v191 = vld [vmem:[%s1] sm:$0xf]
      %v192 = vld [vmem:[%s1 + $0x4] sm:$0xf]
      %v193 = vld [vmem:[%s1 + $0x8] sm:$0xf]
      %v194 = vld [vmem:[%s1 + $0xc] sm:$0xf]
      %v195 = vld [vmem:[%s1 + $0x10] sm:$0xf]
      %v196 = vld [vmem:[%s1 + $0x14] sm:$0xf]
      %v197 = vld [vmem:[%s1 + $0x18] sm:$0xf]
      %v198 = vld [vmem:[%s1 + $0x1c] sm:$0xf]
      %v199 = vld [vmem:[%s1 + $0x20] sm:$0xf]
      %v200 = vld [vmem:[%s1 + $0x24] sm:$0xf]
      %v201 = vld [vmem:[%s1 + $0x28] sm:$0xf]
      %v202 = vld [vmem:[%s1 + $0x2c] sm:$0xf]
      %v203 = vld [vmem:[%s1 + $0x30] sm:$0xf]
      %v204 = vld [vmem:[%s1 + $0x34] sm:$0xf]
      %v205 = vld [vmem:[%s1 + $0x38] sm:$0xf]
      %v206 = vld [vmem:[%s1 + $0x3c] sm:$0xf]
      %v207 = vld [vmem:[%s2] sm:$0x1]
      %v209 = vlaneseq
      %v210 = vshrl.u32 %v209, 7
      %v211 = vsub.s32 0, %v210
      %v212 = vrot.slane %v207, %v211
      %v230 = vunpack.c.l.b16 %v175
      %v231 = vunpack.c.l.b16 %v176
      %v232 = vunpack.c.l.b16 %v177
      %v233 = vunpack.c.l.b16 %v178
      %v234 = vunpack.c.l.b16 %v179
      %v235 = vunpack.c.l.b16 %v180
      %v236 = vunpack.c.l.b16 %v181
      %v237 = vunpack.c.l.b16 %v182
      %v238 = vunpack.c.l.b16 %v183
      %v239 = vunpack.c.l.b16 %v184
      %v240 = vunpack.c.l.b16 %v185
      %v241 = vunpack.c.l.b16 %v186
      %v242 = vunpack.c.l.b16 %v187
      %v243 = vunpack.c.l.b16 %v188
      %v244 = vunpack.c.l.b16 %v189
      %v245 = vunpack.c.l.b16 %v190
      %v246 = vpack.c.b16 %v231, %v230
      %v247 = vpack.c.b16 %v233, %v232
      %v248 = vpack.c.b16 %v235, %v234
      %v249 = vpack.c.b16 %v237, %v236
      %v250 = vpack.c.b16 %v239, %v238
      %v251 = vpack.c.b16 %v241, %v240
      %v252 = vpack.c.b16 %v243, %v242
      %v253 = vpack.c.b16 %v245, %v244
      %v278 = vunpack.c.l.b16 %v191
      %v279 = vunpack.c.l.b16 %v192
      %v280 = vunpack.c.l.b16 %v193
      %v281 = vunpack.c.l.b16 %v194
      %v282 = vunpack.c.l.b16 %v195
      %v283 = vunpack.c.l.b16 %v196
      %v284 = vunpack.c.l.b16 %v197
      %v285 = vunpack.c.l.b16 %v198
      %v286 = vunpack.c.l.b16 %v199
      %v287 = vunpack.c.l.b16 %v200
      %v288 = vunpack.c.l.b16 %v201
      %v289 = vunpack.c.l.b16 %v202
      %v290 = vunpack.c.l.b16 %v203
      %v291 = vunpack.c.l.b16 %v204
      %v292 = vunpack.c.l.b16 %v205
      %v293 = vunpack.c.l.b16 %v206
      %v294 = vpack.c.b16 %v279, %v278
      %v295 = vpack.c.b16 %v281, %v280
      %v296 = vpack.c.b16 %v283, %v282
      %v297 = vpack.c.b16 %v285, %v284
      %v298 = vpack.c.b16 %v287, %v286
      %v299 = vpack.c.b16 %v289, %v288
      %v300 = vpack.c.b16 %v291, %v290
      %v301 = vpack.c.b16 %v293, %v292
      %310 = vmatprep.subr.bf16.mxu0 0
      %311 = vmatpush1.bf16.msra.mxu0 %v301
      %312 = vmatprep.subr.bf16.mxu0 0
      %313 = vmatpush1.bf16.msra.mxu0 %v300
      %314 = vmatprep.subr.bf16.mxu0 0
      %315 = vmatpush1.bf16.msra.mxu0 %v299
      %316 = vmatprep.subr.bf16.mxu0 0
      %317 = vmatpush1.bf16.msra.mxu0 %v298
      %318 = vmatprep.subr.bf16.mxu0 0
      %319 = vmatpush1.bf16.msra.mxu0 %v297
      %320 = vmatprep.subr.bf16.mxu0 0
      %321 = vmatpush1.bf16.msra.mxu0 %v296
      %322 = vmatprep.subr.bf16.mxu0 0
      %323 = vmatpush1.bf16.msra.mxu0 %v295
      %324 = vmatprep.subr.bf16.mxu0 0
      %325 = vmatpush1.bf16.msra.mxu0 %v294
      %326 = vmatprep.subr.bf16.mxu0 0
      %327 = vmatpush2.bf16.msra.mxu0 0
      %328 = vmatprep.subr.bf16.mxu0 0
      %329 = vmatpush2.bf16.msra.mxu0 0
      %330 = vmatprep.subr.bf16.mxu0 0
      %331 = vmatpush2.bf16.msra.mxu0 0
      %332 = vmatprep.subr.bf16.mxu0 0
      %333 = vmatpush2.bf16.msra.mxu0 0
      %334 = vmatprep.subr.bf16.mxu0 0
      %335 = vmatpush2.bf16.msra.mxu0 0
      %336 = vmatprep.subr.bf16.mxu0 0
      %337 = vmatpush2.bf16.msra.mxu0 0
      %338 = vmatprep.subr.bf16.mxu0 0
      %339 = vmatpush2.bf16.msra.mxu0 0
      %340 = vmatprep.subr.bf16.mxu0 0
      %341 = vmatpush2.bf16.msra.mxu0 0
      %342 = vmatprep.mubr.bf16.mxu0 0
      %343 = vmatmul.mubr.bf16.gmra.mxu0 %v246
      %v344 = vpop.f32.mrf.mxu0
      %v345 = vadd.f32 %v212, %v344
      %v346 = vpop.f32.mrf.mxu0
      %v347 = vpop.f32.mrf.mxu0
      %v348 = vadd.f32 %v212, %v347
      %v349 = vpop.f32.mrf.mxu0
      %350 = vmatprep.mubr.bf16.mxu0 0
      %351 = vmatmul.mubr.bf16.gmra.mxu0 %v247
      %v352 = vpop.f32.mrf.mxu0
      %v353 = vadd.f32 %v212, %v352
      %v354 = vpop.f32.mrf.mxu0
      %v355 = vpop.f32.mrf.mxu0
      %v356 = vadd.f32 %v212, %v355
      %v357 = vpop.f32.mrf.mxu0
      %358 = vmatprep.mubr.bf16.mxu0 0
      %359 = vmatmul.mubr.bf16.gmra.mxu0 %v248
      %v360 = vpop.f32.mrf.mxu0
      %v361 = vadd.f32 %v212, %v360
      %v362 = vpop.f32.mrf.mxu0
      %v363 = vpop.f32.mrf.mxu0
      %v364 = vadd.f32 %v212, %v363
      %v365 = vpop.f32.mrf.mxu0
      %366 = vmatprep.mubr.bf16.mxu0 0
      %367 = vmatmul.mubr.bf16.gmra.mxu0 %v249
      %v368 = vpop.f32.mrf.mxu0
      %v369 = vadd.f32 %v212, %v368
      %v370 = vpop.f32.mrf.mxu0
      %v371 = vpop.f32.mrf.mxu0
      %v372 = vadd.f32 %v212, %v371
      %v373 = vpop.f32.mrf.mxu0
      %374 = vmatprep.mubr.bf16.mxu0 0
      %375 = vmatmul.mubr.bf16.gmra.mxu0 %v250
      %v376 = vpop.f32.mrf.mxu0
      %v377 = vadd.f32 %v212, %v376
      %v378 = vpop.f32.mrf.mxu0
      %v379 = vpop.f32.mrf.mxu0
      %v380 = vadd.f32 %v212, %v379
      %v381 = vpop.f32.mrf.mxu0
      %382 = vmatprep.mubr.bf16.mxu0 0
      %383 = vmatmul.mubr.bf16.gmra.mxu0 %v251
      %v384 = vpop.f32.mrf.mxu0
      %v385 = vadd.f32 %v212, %v384
      %v386 = vpop.f32.mrf.mxu0
      %v387 = vpop.f32.mrf.mxu0
      %v388 = vadd.f32 %v212, %v387
      %v389 = vpop.f32.mrf.mxu0
      %390 = vmatprep.mubr.bf16.mxu0 0
      %391 = vmatmul.mubr.bf16.gmra.mxu0 %v252
      %v392 = vpop.f32.mrf.mxu0
      %v393 = vadd.f32 %v212, %v392
      %v394 = vpop.f32.mrf.mxu0
      %v395 = vpop.f32.mrf.mxu0
      %v396 = vadd.f32 %v212, %v395
      %v397 = vpop.f32.mrf.mxu0
      %398 = vmatprep.mubr.bf16.mxu0 0
      %399 = vmatmul.mubr.bf16.gmra.mxu0 %v253
      %v400 = vpop.f32.mrf.mxu0
      %v401 = vadd.f32 %v212, %v400
      %v402 = vpop.f32.mrf.mxu0
      %v403 = vpop.f32.mrf.mxu0
      %v404 = vadd.f32 %v212, %v403
      %v405 = vpop.f32.mrf.mxu0
      %406 = vdwg.mxu0
      %v407 = vmax.f32 %v345, 0.0
      %v408 = vmax.f32 %v348, 0.0
      %v409 = vmax.f32 %v353, 0.0
      %v410 = vmax.f32 %v356, 0.0
      %v411 = vmax.f32 %v361, 0.0
      %v412 = vmax.f32 %v364, 0.0
      %v413 = vmax.f32 %v369, 0.0
      %v414 = vmax.f32 %v372, 0.0
      %v415 = vmax.f32 %v377, 0.0
      %v416 = vmax.f32 %v380, 0.0
      %v417 = vmax.f32 %v385, 0.0
      %v418 = vmax.f32 %v388, 0.0
      %v419 = vmax.f32 %v393, 0.0
      %v420 = vmax.f32 %v396, 0.0
      %v421 = vmax.f32 %v401, 0.0
      %v422 = vmax.f32 %v404, 0.0
      %423 = vst [vmem:[%s172] sm:$0xff] %v407
      %424 = vst [vmem:[%s172 + $0x8] sm:$0xff] %v408
      %425 = vst [vmem:[%s172 + $0x10] sm:$0xff] %v409
      %426 = vst [vmem:[%s172 + $0x18] sm:$0xff] %v410
      %427 = vst [vmem:[%s172 + $0x20] sm:$0xff] %v411
      %428 = vst [vmem:[%s172 + $0x28] sm:$0xff] %v412
      %429 = vst [vmem:[%s172 + $0x30] sm:$0xff] %v413
      %430 = vst [vmem:[%s172 + $0x38] sm:$0xff] %v414
      %431 = vst [vmem:[%s172 + $0x40] sm:$0xff] %v415
      %432 = vst [vmem:[%s172 + $0x48] sm:$0xff] %v416
      %433 = vst [vmem:[%s172 + $0x50] sm:$0xff] %v417
      %434 = vst [vmem:[%s172 + $0x58] sm:$0xff] %v418
      %435 = vst [vmem:[%s172 + $0x60] sm:$0xff] %v419
      %436 = vst [vmem:[%s172 + $0x68] sm:$0xff] %v420
      %437 = vst [vmem:[%s172 + $0x70] sm:$0xff] %v421
      %438 = vst [vmem:[%s172 + $0x78] sm:$0xff] %v422
      %s439 = smul.u32 16, %s14
      %p440 = scmp.lt.s32.totalorder %s439, 63
      %s441 = scalar_select %p440, %s439, 63
      %s442 = smul.addr %s441, 8
      %s443 = scalar_lea.vmem %s3, %s442
      // Predicated region
      $region33: #{bottleneck_forward.4} parent=31 // pred_check
        %p444 = pneg %p100
      $region34: #{bottleneck_forward.4} parent=31 // pred_check_branch
        %446 = sbr.rel (%p444) target = $region36
      $region35: #{bottleneck_forward.4} parent=31 // pred_region
        %s447 = smul.u32 16, %s14
      $region36: #{bottleneck_forward.4} parent=31 // pred_fallthru
        _
    $region32: #{bottleneck_forward.4} parent=5 // pred_fallthru
      _
    %p448 = scmp.le.s32.totalorder 2, %s9
    // Predicated region
    $region37: #{bottleneck_forward.4} parent=5 // pred_check
      %p449 = pneg %p448
    $region38: #{bottleneck_forward.4} parent=5 // pred_check_branch
      %451 = sbr.rel (%p449) target = $region40
    $region39: #{bottleneck_forward.4} parent=5 // pred_region
      %s452 = ssub.s32 %s9, 2
      // Predicated region
      $region41: #{bottleneck_forward.4} parent=39 // pred_check
        %p453 = pneg %p106
      $region42: #{bottleneck_forward.4} parent=39 // pred_check_branch
        %455 = sbr.rel (%p453) target = $region44
      $region43: #{bottleneck_forward.4} parent=39 // pred_region
        %s456 = smul.u32 16, %s15
        %p457 = scmp.lt.s32.totalorder %s456, 63
        %s458 = scalar_select %p457, %s456, 63
        %s459 = smul.addr %s458, 8
        %s460 = scalar_lea.vmem %s3, %s459
      $region44: #{bottleneck_forward.4} parent=39 // pred_fallthru
        _
    $region40: #{bottleneck_forward.4} parent=5 // pred_fallthru
      _
  $region6: #{bottleneck_forward.4} parent=0 // loop_footer
    %s13 = sadd.s32 1, %s9
  $region7: #{bottleneck_forward.4} parent=0 // loop_footer_branch
    %8 = sbr.rel target = $region3
  $region8: #{bottleneck_forward.4} parent=0 // loop_exit
    _

// kernel: bottleneck_forward.5
$region0: #{bottleneck_forward.5}
  #allocation0 [shape = 'u32[]', space=smem, size = 0x4, offset = 0x4, fixed_abs, tag = 'smem constant byte address 0x4 - core index']
  #allocation1 [shape = 'u32[144,128]{1,0:T(1,128)}', space=vmem, size = 0x12000, scoped, tag = 'internal scratch']
  %s0 = inlined_call_operand.vmem [shape: bf16[512,256], index: 0, kind: input, shape index: {}]
  %s1 = inlined_call_operand.vmem [shape: bf16[256,128], index: 1, kind: input, shape index: {}]
  %s2 = inlined_call_operand.vmem [shape: f32[1,128], index: 2, kind: input, shape index: {}]
  %s3 = inlined_call_operand.vmem [shape: f32[512,128], index: 3, kind: output, shape index: {}]
  %s4 = sld [smem:[#allocation0]]
  $region45: #{bottleneck_forward.5} parent=0
    _
  %s6 = ssub.s32 1, %s4
  %s7 = scalar_select 0, %s6, %s4
  loop: start=0, step=1, limit=6
  $region2: #{bottleneck_forward.5} parent=0 // loop_pre_header
    _
  $region3: #{bottleneck_forward.5} parent=0 // loop_header
    %s9 = sphi 0, %s13
    %p10 = scmp.ge.s32.totalorder %s9, 6
    %s19 = sphi 0, %s21
    %s22 = sphi 0, %s19
    %s23 = sphi 0, %s22
    %s39 = sphi 0, %s23
    %s43 = sphi 0, %s43
    %s45 = sphi 0, %s43
    %s46 = sphi 0, %s45
    %s60 = sphi 0, %s46
    %s64 = sphi 0, %s64
    %s66 = sphi 0, %s64
    %s67 = sphi 0, %s66
    %s81 = sphi 0, %s67
    %s87 = sphi 0, %s89
    %s90 = sphi 0, %s87
    %s91 = sphi 0, %s90
    %s107 = sphi 0, %s91
  $region4: #{bottleneck_forward.5} parent=0 // loop_header_branch
    %12 = sbr.rel (%p10) target = $region8
  $region5: #{bottleneck_forward.5} parent=0 // loop_body
    %s14 = ssub.s32 %s9, 1
    %s15 = ssub.s32 %s9, 2
    %s16 = sadd.s32 %s9, 1
    %s17 = ssub.s32 %s9, %s16
    %p18 = scmp.eq.s32.totalorder %s17, 0
    %s20 = sadd.s32 %s19, 1
    %s21 = scalar_select %p18, %s19, %s20
    %p24 = pneg %p18
    %p25 = scmp.eq.s32.totalorder %s9, 3
    %p26 = por %p24, %p25
    %p27 = scmp.ne.s32.totalorder %s19, %s22
    %p28 = scmp.eq.s32.totalorder %s9, 0
    %p29 = por %p27, %p28
    %p30 = scmp.ne.s32.totalorder %s19, %s22
    %p31 = scmp.eq.s32.totalorder %s14, 3
    %p32 = por %p30, %p31
    %p33 = scmp.ne.s32.totalorder %s22, %s23
    %p34 = scmp.eq.s32.totalorder %s14, 0
    %p35 = por %p33, %p34
    %p36 = scmp.ne.s32.totalorder %s22, %s23
    %p37 = scmp.eq.s32.totalorder %s15, 3
    %p38 = por %p36, %p37
    %p40 = scmp.ne.s32.totalorder %s23, %s39
    %p41 = scmp.eq.s32.totalorder %s15, 0
    %p42 = por %p40, %p41
    %s44 = sadd.s32 %s43, 1
    %p47 = scmp.eq.s32.totalorder %s9, 3
    %p48 = scmp.ne.s32.totalorder %s43, %s45
    %p49 = scmp.eq.s32.totalorder %s9, 0
    %p50 = por %p48, %p49
    %p51 = scmp.ne.s32.totalorder %s43, %s45
    %p52 = scmp.eq.s32.totalorder %s14, 3
    %p53 = por %p51, %p52
    %p54 = scmp.ne.s32.totalorder %s45, %s46
    %p55 = scmp.eq.s32.totalorder %s14, 0
    %p56 = por %p54, %p55
    %p57 = scmp.ne.s32.totalorder %s45, %s46
    %p58 = scmp.eq.s32.totalorder %s15, 3
    %p59 = por %p57, %p58
    %p61 = scmp.ne.s32.totalorder %s46, %s60
    %p62 = scmp.eq.s32.totalorder %s15, 0
    %p63 = por %p61, %p62
    %s65 = sadd.s32 %s64, 1
    %p68 = scmp.eq.s32.totalorder %s9, 3
    %p69 = scmp.ne.s32.totalorder %s64, %s66
    %p70 = scmp.eq.s32.totalorder %s9, 0
    %p71 = por %p69, %p70
    %p72 = scmp.ne.s32.totalorder %s64, %s66
    %p73 = scmp.eq.s32.totalorder %s14, 3
    %p74 = por %p72, %p73
    %p75 = scmp.ne.s32.totalorder %s66, %s67
    %p76 = scmp.eq.s32.totalorder %s14, 0
    %p77 = por %p75, %p76
    %p78 = scmp.ne.s32.totalorder %s66, %s67
    %p79 = scmp.eq.s32.totalorder %s15, 3
    %p80 = por %p78, %p79
    %p82 = scmp.ne.s32.totalorder %s67, %s81
    %p83 = scmp.eq.s32.totalorder %s15, 0
    %p84 = por %p82, %p83
    %s85 = ssub.s32 %s9, %s16
    %p86 = scmp.eq.s32.totalorder %s85, 0
    %s88 = sadd.s32 %s87, 1
    %s89 = scalar_select %p86, %s87, %s88
    %p92 = pneg %p86
    %p93 = scmp.eq.s32.totalorder %s9, 3
    %p94 = por %p92, %p93
    %p95 = scmp.ne.s32.totalorder %s87, %s90
    %p96 = scmp.eq.s32.totalorder %s9, 0
    %p97 = por %p95, %p96
    %p98 = scmp.ne.s32.totalorder %s87, %s90
    %p99 = scmp.eq.s32.totalorder %s14, 3
    %p100 = por %p98, %p99
    %p101 = scmp.ne.s32.totalorder %s90, %s91
    %p102 = scmp.eq.s32.totalorder %s14, 0
    %p103 = por %p101, %p102
    %p104 = scmp.ne.s32.totalorder %s90, %s91
    %p105 = scmp.eq.s32.totalorder %s15, 3
    %p106 = por %p104, %p105
    %p108 = scmp.ne.s32.totalorder %s91, %s107
    %p109 = scmp.eq.s32.totalorder %s15, 0
    %p110 = por %p108, %p109
    %p111 = scmp.le.s32.totalorder 1, %s9
    %p112 = scmp.lt.s32.totalorder %s9, 5
    %p113 = pnand %p111, %p112
    %p114 = pneg %p113
    // Predicated region
    $region9: #{bottleneck_forward.5} parent=5 // pred_check
      _
    $region10: #{bottleneck_forward.5} parent=5 // pred_check_branch
      %116 = sbr.rel (%p113) target = $region12
    $region11: #{bottleneck_forward.5} parent=5 // pred_region
      %s117 = ssub.s32 %s9, 1
      // Predicated region
      $region13: #{bottleneck_forward.5} parent=11 // pred_check
        %p118 = pneg %p56
      $region14: #{bottleneck_forward.5} parent=11 // pred_check_branch
        %120 = sbr.rel (%p118) target = $region16
      $region15: #{bottleneck_forward.5} parent=11 // pred_region
        _
      $region16: #{bottleneck_forward.5} parent=11 // pred_fallthru
        _
      // Predicated region
      $region17: #{bottleneck_forward.5} parent=11 // pred_check
        %p121 = pneg %p77
      $region18: #{bottleneck_forward.5} parent=11 // pred_check_branch
        %123 = sbr.rel (%p121) target = $region20
      $region19: #{bottleneck_forward.5} parent=11 // pred_region
        _
      $region20: #{bottleneck_forward.5} parent=11 // pred_fallthru
        _
    $region12: #{bottleneck_forward.5} parent=5 // pred_fallthru
      _
    %p124 = scmp.lt.s32.totalorder %s9, 4
    // Predicated region
    $region21: #{bottleneck_forward.5} parent=5 // pred_check
      %p125 = pneg %p124
    $region22: #{bottleneck_forward.5} parent=5 // pred_check_branch
      %127 = sbr.rel (%p125) target = $region24
    $region23: #{bottleneck_forward.5} parent=5 // pred_region
      // Predicated region
      $region25: #{bottleneck_forward.5} parent=23 // pred_check
        %p128 = pneg %p29
      $region26: #{bottleneck_forward.5} parent=23 // pred_check_branch
        %130 = sbr.rel (%p128) target = $region28
      $region27: #{bottleneck_forward.5} parent=23 // pred_region
        %s131 = smul.u32 16, %s9
        %p132 = scmp.lt.s32.totalorder %s131, 63
        %s133 = scalar_select %p132, %s131, 63
        %s134 = smul.addr %s133, 2
        %s135 = smul.addr %s134, 4
        %s136 = scalar_lea.vmem %s0, %s135
        %s137 = smul.u32 16, %s9
      $region28: #{bottleneck_forward.5} parent=23 // pred_fallthru
        _
    $region24: #{bottleneck_forward.5} parent=5 // pred_fallthru
      _
    %p138 = scmp.le.s32.totalorder 1, %s9
    %p139 = scmp.lt.s32.totalorder %s9, 5
    %p140 = pnand %p138, %p139
    %p141 = pneg %p140
    // Predicated region
    $region29: #{bottleneck_forward.5} parent=5 // pred_check
      _
    $region30: #{bottleneck_forward.5} parent=5 // pred_check_branch
      %143 = sbr.rel (%p140) target = $region32
    $region31: #{bottleneck_forward.5} parent=5 // pred_region
      %s144 = ssub.s32 %s9, 1
      %s145 = smul.u32 16, %s14
      %p146 = scmp.lt.s32.totalorder %s145, 63
      %s147 = scalar_select %p146, %s145, 63
      %s148 = smul.addr %s147, 2
      %s149 = smul.addr %s148, 4
      %s150 = scalar_lea.vmem %s0, %s149
      %p151 = pneg %p35
      %p152 = pneg %p32
      %p153 = pneg %p56
      %p154 = pneg %p53
      %p155 = pneg %p77
      %p156 = pneg %p74
      %p157 = pneg %p103
      %p158 = pneg %p100
      %s159 = smul.u32 16, %s14
      %p160 = scmp.lt.s32.totalorder %s159, 63
      %s161 = scalar_select %p160, %s159, 63
      %s162 = smul.addr %s161, 8
      %s163 = scalar_lea.vmem %s3, %s162
      %s164 = smul.u32 16, %s14
      %p165 = scmp.lt.s32.totalorder %s164, 63
      %s166 = scalar_select %p165, %s164, 63
      %s167 = smul.addr %s166, 2
      %s168 = smul.addr %s167, 4
      %s169 = scalar_lea.vmem %s0, %s168
      %s170 = smul.u32 16, %s14
      %s171 = smul.u32 16, %s14
      %p172 = scmp.lt.s32.totalorder %s171, 63
      %s173 = scalar_select %p172, %s171, 63
      %s174 = smul.addr %s173, 8
      %s175 = scalar_lea.vmem %s3, %s174
      %s176 = smul.u32 16, %s14
      %v178 = vld [vmem:[%s169] sm:$0xff]
      %v179 = vld [vmem:[%s169 + $0x8] sm:$0xff]
      %v180 = vld [vmem:[%s169 + $0x10] sm:$0xff]
      %v181 = vld [vmem:[%s169 + $0x18] sm:$0xff]
      %v182 = vld [vmem:[%s169 + $0x20] sm:$0xff]
      %v183 = vld [vmem:[%s169 + $0x28] sm:$0xff]
      %v184 = vld [vmem:[%s169 + $0x30] sm:$0xff]
      %v185 = vld [vmem:[%s169 + $0x38] sm:$0xff]
      %v186 = vld [vmem:[%s169 + $0x40] sm:$0xff]
      %v187 = vld [vmem:[%s169 + $0x48] sm:$0xff]
      %v188 = vld [vmem:[%s169 + $0x50] sm:$0xff]
      %v189 = vld [vmem:[%s169 + $0x58] sm:$0xff]
      %v190 = vld [vmem:[%s169 + $0x60] sm:$0xff]
      %v191 = vld [vmem:[%s169 + $0x68] sm:$0xff]
      %v192 = vld [vmem:[%s169 + $0x70] sm:$0xff]
      %v193 = vld [vmem:[%s169 + $0x78] sm:$0xff]
      %v194 = vld [vmem:[%s1] sm:$0xf]
      %v195 = vld [vmem:[%s1 + $0x4] sm:$0xf]
      %v196 = vld [vmem:[%s1 + $0x8] sm:$0xf]
      %v197 = vld [vmem:[%s1 + $0xc] sm:$0xf]
      %v198 = vld [vmem:[%s1 + $0x10] sm:$0xf]
      %v199 = vld [vmem:[%s1 + $0x14] sm:$0xf]
      %v200 = vld [vmem:[%s1 + $0x18] sm:$0xf]
      %v201 = vld [vmem:[%s1 + $0x1c] sm:$0xf]
      %v202 = vld [vmem:[%s1 + $0x20] sm:$0xf]
      %v203 = vld [vmem:[%s1 + $0x24] sm:$0xf]
      %v204 = vld [vmem:[%s1 + $0x28] sm:$0xf]
      %v205 = vld [vmem:[%s1 + $0x2c] sm:$0xf]
      %v206 = vld [vmem:[%s1 + $0x30] sm:$0xf]
      %v207 = vld [vmem:[%s1 + $0x34] sm:$0xf]
      %v208 = vld [vmem:[%s1 + $0x38] sm:$0xf]
      %v209 = vld [vmem:[%s1 + $0x3c] sm:$0xf]
      %v210 = vld [vmem:[%s1 + $0x40] sm:$0xf]
      %v211 = vld [vmem:[%s1 + $0x44] sm:$0xf]
      %v212 = vld [vmem:[%s1 + $0x48] sm:$0xf]
      %v213 = vld [vmem:[%s1 + $0x4c] sm:$0xf]
      %v214 = vld [vmem:[%s1 + $0x50] sm:$0xf]
      %v215 = vld [vmem:[%s1 + $0x54] sm:$0xf]
      %v216 = vld [vmem:[%s1 + $0x58] sm:$0xf]
      %v217 = vld [vmem:[%s1 + $0x5c] sm:$0xf]
      %v218 = vld [vmem:[%s1 + $0x60] sm:$0xf]
      %v219 = vld [vmem:[%s1 + $0x64] sm:$0xf]
      %v220 = vld [vmem:[%s1 + $0x68] sm:$0xf]
      %v221 = vld [vmem:[%s1 + $0x6c] sm:$0xf]
      %v222 = vld [vmem:[%s1 + $0x70] sm:$0xf]
      %v223 = vld [vmem:[%s1 + $0x74] sm:$0xf]
      %v224 = vld [vmem:[%s1 + $0x78] sm:$0xf]
      %v225 = vld [vmem:[%s1 + $0x7c] sm:$0xf]
      %v226 = vld [vmem:[%s2] sm:$0x1]
      %v228 = vlaneseq
      %v229 = vshrl.u32 %v228, 7
      %v230 = vsub.s32 0, %v229
      %v231 = vrot.slane %v226, %v230
      %v249 = vunpack.c.l.b16 %v178
      %v250 = vunpack.c.h.b16 %v178
      %v251 = vunpack.c.l.b16 %v179
      %v252 = vunpack.c.h.b16 %v179
      %v253 = vunpack.c.l.b16 %v180
      %v254 = vunpack.c.h.b16 %v180
      %v255 = vunpack.c.l.b16 %v181
      %v256 = vunpack.c.h.b16 %v181
      %v257 = vunpack.c.l.b16 %v182
      %v258 = vunpack.c.h.b16 %v182
      %v259 = vunpack.c.l.b16 %v183
      %v260 = vunpack.c.h.b16 %v183
      %v261 = vunpack.c.l.b16 %v184
      %v262 = vunpack.c.h.b16 %v184
      %v263 = vunpack.c.l.b16 %v185
      %v264 = vunpack.c.h.b16 %v185
      %v265 = vunpack.c.l.b16 %v186
      %v266 = vunpack.c.h.b16 %v186
      %v267 = vunpack.c.l.b16 %v187
      %v268 = vunpack.c.h.b16 %v187
      %v269 = vunpack.c.l.b16 %v188
      %v270 = vunpack.c.h.b16 %v188
      %v271 = vunpack.c.l.b16 %v189
      %v272 = vunpack.c.h.b16 %v189
      %v273 = vunpack.c.l.b16 %v190
      %v274 = vunpack.c.h.b16 %v190
      %v275 = vunpack.c.l.b16 %v191
      %v276 = vunpack.c.h.b16 %v191
      %v277 = vunpack.c.l.b16 %v192
      %v278 = vunpack.c.h.b16 %v192
      %v279 = vunpack.c.l.b16 %v193
      %v280 = vunpack.c.h.b16 %v193
      %v281 = vpack.c.b16 %v251, %v249
      %v282 = vpack.c.b16 %v252, %v250
      %v283 = vpack.c.b16 %v255, %v253
      %v284 = vpack.c.b16 %v256, %v254
      %v285 = vpack.c.b16 %v259, %v257
      %v286 = vpack.c.b16 %v260, %v258
      %v287 = vpack.c.b16 %v263, %v261
      %v288 = vpack.c.b16 %v264, %v262
      %v289 = vpack.c.b16 %v267, %v265
      %v290 = vpack.c.b16 %v268, %v266
      %v291 = vpack.c.b16 %v271, %v269
      %v292 = vpack.c.b16 %v272, %v270
      %v293 = vpack.c.b16 %v275, %v273
      %v294 = vpack.c.b16 %v276, %v274
      %v295 = vpack.c.b16 %v279, %v277
      %v296 = vpack.c.b16 %v280, %v278
      %v345 = vunpack.c.l.b16 %v194
      %v346 = vunpack.c.l.b16 %v195
      %v347 = vunpack.c.l.b16 %v196
      %v348 = vunpack.c.l.b16 %v197
      %v349 = vunpack.c.l.b16 %v198
      %v350 = vunpack.c.l.b16 %v199
      %v351 = vunpack.c.l.b16 %v200
      %v352 = vunpack.c.l.b16 %v201
      %v353 = vunpack.c.l.b16 %v202
      %v354 = vunpack.c.l.b16 %v203
      %v355 = vunpack.c.l.b16 %v204
      %v356 = vunpack.c.l.b16 %v205
      %v357 = vunpack.c.l.b16 %v206
      %v358 = vunpack.c.l.b16 %v207
      %v359 = vunpack.c.l.b16 %v208
      %v360 = vunpack.c.l.b16 %v209
      %v361 = vunpack.c.l.b16 %v210
      %v362 = vunpack.c.l.b16 %v211
      %v363 = vunpack.c.l.b16 %v212
      %v364 = vunpack.c.l.b16 %v213
      %v365 = vunpack.c.l.b16 %v214
      %v366 = vunpack.c.l.b16 %v215
      %v367 = vunpack.c.l.b16 %v216
      %v368 = vunpack.c.l.b16 %v217
      %v369 = vunpack.c.l.b16 %v218
      %v370 = vunpack.c.l.b16 %v219
      %v371 = vunpack.c.l.b16 %v220
      %v372 = vunpack.c.l.b16 %v221
      %v373 = vunpack.c.l.b16 %v222
      %v374 = vunpack.c.l.b16 %v223
      %v375 = vunpack.c.l.b16 %v224
      %v376 = vunpack.c.l.b16 %v225
      %v377 = vpack.c.b16 %v346, %v345
      %v378 = vpack.c.b16 %v348, %v347
      %v379 = vpack.c.b16 %v350, %v349
      %v380 = vpack.c.b16 %v352, %v351
      %v381 = vpack.c.b16 %v354, %v353
      %v382 = vpack.c.b16 %v356, %v355
      %v383 = vpack.c.b16 %v358, %v357
      %v384 = vpack.c.b16 %v360, %v359
      %v385 = vpack.c.b16 %v362, %v361
      %v386 = vpack.c.b16 %v364, %v363
      %v387 = vpack.c.b16 %v366, %v365
      %v388 = vpack.c.b16 %v368, %v367
      %v389 = vpack.c.b16 %v370, %v369
      %v390 = vpack.c.b16 %v372, %v371
      %v391 = vpack.c.b16 %v374, %v373
      %v392 = vpack.c.b16 %v376, %v375
      %409 = vmatprep.subr.bf16.mxu0 0
      %410 = vmatpush1.bf16.msra.mxu0 %v384
      %411 = vmatprep.subr.bf16.mxu0 0
      %412 = vmatpush1.bf16.msra.mxu0 %v383
      %413 = vmatprep.subr.bf16.mxu0 0
      %414 = vmatpush1.bf16.msra.mxu0 %v382
      %415 = vmatprep.subr.bf16.mxu0 0
      %416 = vmatpush1.bf16.msra.mxu0 %v381
      %417 = vmatprep.subr.bf16.mxu0 0
      %418 = vmatpush1.bf16.msra.mxu0 %v380
      %419 = vmatprep.subr.bf16.mxu0 0
      %420 = vmatpush1.bf16.msra.mxu0 %v379
      %421 = vmatprep.subr.bf16.mxu0 0
      %422 = vmatpush1.bf16.msra.mxu0 %v378
      %423 = vmatprep.subr.bf16.mxu0 0
      %424 = vmatpush1.bf16.msra.mxu0 %v377
      %425 = vmatprep.subr.bf16.mxu0 0
      %426 = vmatpush2.bf16.msra.mxu0 %v392
      %427 = vmatprep.subr.bf16.mxu0 0
      %428 = vmatpush2.bf16.msra.mxu0 %v391
      %429 = vmatprep.subr.bf16.mxu0 0
      %430 = vmatpush2.bf16.msra.mxu0 %v390
      %431 = vmatprep.subr.bf16.mxu0 0
      %432 = vmatpush2.bf16.msra.mxu0 %v389
      %433 = vmatprep.subr.bf16.mxu0 0
      %434 = vmatpush2.bf16.msra.mxu0 %v388
      %435 = vmatprep.subr.bf16.mxu0 0
      %436 = vmatpush2.bf16.msra.mxu0 %v387
      %437 = vmatprep.subr.bf16.mxu0 0
      %438 = vmatpush2.bf16.msra.mxu0 %v386
      %439 = vmatprep.subr.bf16.mxu0 0
      %440 = vmatpush2.bf16.msra.mxu0 %v385
      %441 = vmatprep.mubr.bf16.mxu0 %v282
      %442 = vmatmul.mubr.bf16.gmra.mxu0 %v281
      %v443 = vpop.f32.mrf.mxu0
      %v444 = vadd.f32 %v231, %v443
      %v445 = vpop.f32.mrf.mxu0
      %v446 = vpop.f32.mrf.mxu0
      %v447 = vadd.f32 %v231, %v446
      %v448 = vpop.f32.mrf.mxu0
      %449 = vmatprep.mubr.bf16.mxu0 %v284
      %450 = vmatmul.mubr.bf16.gmra.mxu0 %v283
      %v451 = vpop.f32.mrf.mxu0
      %v452 = vadd.f32 %v231, %v451
      %v453 = vpop.f32.mrf.mxu0
      %v454 = vpop.f32.mrf.mxu0
      %v455 = vadd.f32 %v231, %v454
      %v456 = vpop.f32.mrf.mxu0
      %457 = vmatprep.mubr.bf16.mxu0 %v286
      %458 = vmatmul.mubr.bf16.gmra.mxu0 %v285
      %v459 = vpop.f32.mrf.mxu0
      %v460 = vadd.f32 %v231, %v459
      %v461 = vpop.f32.mrf.mxu0
      %v462 = vpop.f32.mrf.mxu0
      %v463 = vadd.f32 %v231, %v462
      %v464 = vpop.f32.mrf.mxu0
      %465 = vmatprep.mubr.bf16.mxu0 %v288
      %466 = vmatmul.mubr.bf16.gmra.mxu0 %v287
      %v467 = vpop.f32.mrf.mxu0
      %v468 = vadd.f32 %v231, %v467
      %v469 = vpop.f32.mrf.mxu0
      %v470 = vpop.f32.mrf.mxu0
      %v471 = vadd.f32 %v231, %v470
      %v472 = vpop.f32.mrf.mxu0
      %473 = vmatprep.mubr.bf16.mxu0 %v290
      %474 = vmatmul.mubr.bf16.gmra.mxu0 %v289
      %v475 = vpop.f32.mrf.mxu0
      %v476 = vadd.f32 %v231, %v475
      %v477 = vpop.f32.mrf.mxu0
      %v478 = vpop.f32.mrf.mxu0
      %v479 = vadd.f32 %v231, %v478
      %v480 = vpop.f32.mrf.mxu0
      %481 = vmatprep.mubr.bf16.mxu0 %v292
      %482 = vmatmul.mubr.bf16.gmra.mxu0 %v291
      %v483 = vpop.f32.mrf.mxu0
      %v484 = vadd.f32 %v231, %v483
      %v485 = vpop.f32.mrf.mxu0
      %v486 = vpop.f32.mrf.mxu0
      %v487 = vadd.f32 %v231, %v486
      %v488 = vpop.f32.mrf.mxu0
      %489 = vmatprep.mubr.bf16.mxu0 %v294
      %490 = vmatmul.mubr.bf16.gmra.mxu0 %v293
      %v491 = vpop.f32.mrf.mxu0
      %v492 = vadd.f32 %v231, %v491
      %v493 = vpop.f32.mrf.mxu0
      %v494 = vpop.f32.mrf.mxu0
      %v495 = vadd.f32 %v231, %v494
      %v496 = vpop.f32.mrf.mxu0
      %497 = vmatprep.mubr.bf16.mxu0 %v296
      %498 = vmatmul.mubr.bf16.gmra.mxu0 %v295
      %v499 = vpop.f32.mrf.mxu0
      %v500 = vadd.f32 %v231, %v499
      %v501 = vpop.f32.mrf.mxu0
      %v502 = vpop.f32.mrf.mxu0
      %v503 = vadd.f32 %v231, %v502
      %v504 = vpop.f32.mrf.mxu0
      %505 = vdwg.mxu0
      %v506 = vmax.f32 %v444, 0.0
      %v507 = vmax.f32 %v447, 0.0
      %v508 = vmax.f32 %v452, 0.0
      %v509 = vmax.f32 %v455, 0.0
      %v510 = vmax.f32 %v460, 0.0
      %v511 = vmax.f32 %v463, 0.0
      %v512 = vmax.f32 %v468, 0.0
      %v513 = vmax.f32 %v471, 0.0
      %v514 = vmax.f32 %v476, 0.0
      %v515 = vmax.f32 %v479, 0.0
      %v516 = vmax.f32 %v484, 0.0
      %v517 = vmax.f32 %v487, 0.0
      %v518 = vmax.f32 %v492, 0.0
      %v519 = vmax.f32 %v495, 0.0
      %v520 = vmax.f32 %v500, 0.0
      %v521 = vmax.f32 %v503, 0.0
      %522 = vst [vmem:[%s175] sm:$0xff] %v506
      %523 = vst [vmem:[%s175 + $0x8] sm:$0xff] %v507
      %524 = vst [vmem:[%s175 + $0x10] sm:$0xff] %v508
      %525 = vst [vmem:[%s175 + $0x18] sm:$0xff] %v509
      %526 = vst [vmem:[%s175 + $0x20] sm:$0xff] %v510
      %527 = vst [vmem:[%s175 + $0x28] sm:$0xff] %v511
      %528 = vst [vmem:[%s175 + $0x30] sm:$0xff] %v512
      %529 = vst [vmem:[%s175 + $0x38] sm:$0xff] %v513
      %530 = vst [vmem:[%s175 + $0x40] sm:$0xff] %v514
      %531 = vst [vmem:[%s175 + $0x48] sm:$0xff] %v515
      %532 = vst [vmem:[%s175 + $0x50] sm:$0xff] %v516
      %533 = vst [vmem:[%s175 + $0x58] sm:$0xff] %v517
      %534 = vst [vmem:[%s175 + $0x60] sm:$0xff] %v518
      %535 = vst [vmem:[%s175 + $0x68] sm:$0xff] %v519
      %536 = vst [vmem:[%s175 + $0x70] sm:$0xff] %v520
      %537 = vst [vmem:[%s175 + $0x78] sm:$0xff] %v521
      %s538 = smul.u32 16, %s14
      %p539 = scmp.lt.s32.totalorder %s538, 63
      %s540 = scalar_select %p539, %s538, 63
      %s541 = smul.addr %s540, 8
      %s542 = scalar_lea.vmem %s3, %s541
      // Predicated region
      $region33: #{bottleneck_forward.5} parent=31 // pred_check
        %p543 = pneg %p100
      $region34: #{bottleneck_forward.5} parent=31 // pred_check_branch
        %545 = sbr.rel (%p543) target = $region36
      $region35: #{bottleneck_forward.5} parent=31 // pred_region
        %s546 = smul.u32 16, %s14
      $region36: #{bottleneck_forward.5} parent=31 // pred_fallthru
        _
    $region32: #{bottleneck_forward.5} parent=5 // pred_fallthru
      _
    %p547 = scmp.le.s32.totalorder 2, %s9
    // Predicated region
    $region37: #{bottleneck_forward.5} parent=5 // pred_check
      %p548 = pneg %p547
    $region38: #{bottleneck_forward.5} parent=5 // pred_check_branch
      %550 = sbr.rel (%p548) target = $region40
    $region39: #{bottleneck_forward.5} parent=5 // pred_region
      %s551 = ssub.s32 %s9, 2
      // Predicated region
      $region41: #{bottleneck_forward.5} parent=39 // pred_check
        %p552 = pneg %p106
      $region42: #{bottleneck_forward.5} parent=39 // pred_check_branch
        %554 = sbr.rel (%p552) target = $region44
      $region43: #{bottleneck_forward.5} parent=39 // pred_region
        %s555 = smul.u32 16, %s15
        %p556 = scmp.lt.s32.totalorder %s555, 63
        %s557 = scalar_select %p556, %s555, 63
        %s558 = smul.addr %s557, 8
        %s559 = scalar_lea.vmem %s3, %s558
      $region44: #{bottleneck_forward.5} parent=39 // pred_fallthru
        _
    $region40: #{bottleneck_forward.5} parent=5 // pred_fallthru
      _
  $region6: #{bottleneck_forward.5} parent=0 // loop_footer
    %s13 = sadd.s32 1, %s9
  $region7: #{bottleneck_forward.5} parent=0 // loop_footer_branch
    %8 = sbr.rel target = $region3
  $region8: #{bottleneck_forward.5} parent=0 // loop_exit
    _

// kernel: bottleneck_forward.6
$region0: #{bottleneck_forward.6}
  #allocation0 [shape = 'u32[]', space=smem, size = 0x4, offset = 0x4, fixed_abs, tag = 'smem constant byte address 0x4 - core index']
  #allocation1 [shape = 'u32[144,128]{1,0:T(1,128)}', space=vmem, size = 0x12000, scoped, tag = 'internal scratch']
  %s0 = inlined_call_operand.vmem [shape: bf16[512,640], index: 0, kind: input, shape index: {}]
  %s1 = inlined_call_operand.vmem [shape: bf16[640,128], index: 1, kind: input, shape index: {}]
  %s2 = inlined_call_operand.vmem [shape: f32[1,128], index: 2, kind: input, shape index: {}]
  %s3 = inlined_call_operand.vmem [shape: f32[512,128], index: 3, kind: output, shape index: {}]
  %s4 = sld [smem:[#allocation0]]
  $region45: #{bottleneck_forward.6} parent=0
    _
  %s6 = ssub.s32 1, %s4
  %s7 = scalar_select 0, %s6, %s4
  loop: start=0, step=1, limit=6
  $region2: #{bottleneck_forward.6} parent=0 // loop_pre_header
    _
  $region3: #{bottleneck_forward.6} parent=0 // loop_header
    %s9 = sphi 0, %s13
    %p10 = scmp.ge.s32.totalorder %s9, 6
    %s19 = sphi 0, %s21
    %s22 = sphi 0, %s19
    %s23 = sphi 0, %s22
    %s39 = sphi 0, %s23
    %s43 = sphi 0, %s43
    %s45 = sphi 0, %s43
    %s46 = sphi 0, %s45
    %s60 = sphi 0, %s46
    %s64 = sphi 0, %s64
    %s66 = sphi 0, %s64
    %s67 = sphi 0, %s66
    %s81 = sphi 0, %s67
    %s87 = sphi 0, %s89
    %s90 = sphi 0, %s87
    %s91 = sphi 0, %s90
    %s107 = sphi 0, %s91
  $region4: #{bottleneck_forward.6} parent=0 // loop_header_branch
    %12 = sbr.rel (%p10) target = $region8
  $region5: #{bottleneck_forward.6} parent=0 // loop_body
    %s14 = ssub.s32 %s9, 1
    %s15 = ssub.s32 %s9, 2
    %s16 = sadd.s32 %s9, 1
    %s17 = ssub.s32 %s9, %s16
    %p18 = scmp.eq.s32.totalorder %s17, 0
    %s20 = sadd.s32 %s19, 1
    %s21 = scalar_select %p18, %s19, %s20
    %p24 = pneg %p18
    %p25 = scmp.eq.s32.totalorder %s9, 3
    %p26 = por %p24, %p25
    %p27 = scmp.ne.s32.totalorder %s19, %s22
    %p28 = scmp.eq.s32.totalorder %s9, 0
    %p29 = por %p27, %p28
    %p30 = scmp.ne.s32.totalorder %s19, %s22
    %p31 = scmp.eq.s32.totalorder %s14, 3
    %p32 = por %p30, %p31
    %p33 = scmp.ne.s32.totalorder %s22, %s23
    %p34 = scmp.eq.s32.totalorder %s14, 0
    %p35 = por %p33, %p34
    %p36 = scmp.ne.s32.totalorder %s22, %s23
    %p37 = scmp.eq.s32.totalorder %s15, 3
    %p38 = por %p36, %p37
    %p40 = scmp.ne.s32.totalorder %s23, %s39
    %p41 = scmp.eq.s32.totalorder %s15, 0
    %p42 = por %p40, %p41
    %s44 = sadd.s32 %s43, 1
    %p47 = scmp.eq.s32.totalorder %s9, 3
    %p48 = scmp.ne.s32.totalorder %s43, %s45
    %p49 = scmp.eq.s32.totalorder %s9, 0
    %p50 = por %p48, %p49
    %p51 = scmp.ne.s32.totalorder %s43, %s45
    %p52 = scmp.eq.s32.totalorder %s14, 3
    %p53 = por %p51, %p52
    %p54 = scmp.ne.s32.totalorder %s45, %s46
    %p55 = scmp.eq.s32.totalorder %s14, 0
    %p56 = por %p54, %p55
    %p57 = scmp.ne.s32.totalorder %s45, %s46
    %p58 = scmp.eq.s32.totalorder %s15, 3
    %p59 = por %p57, %p58
    %p61 = scmp.ne.s32.totalorder %s46, %s60
    %p62 = scmp.eq.s32.totalorder %s15, 0
    %p63 = por %p61, %p62
    %s65 = sadd.s32 %s64, 1
    %p68 = scmp.eq.s32.totalorder %s9, 3
    %p69 = scmp.ne.s32.totalorder %s64, %s66
    %p70 = scmp.eq.s32.totalorder %s9, 0
    %p71 = por %p69, %p70
    %p72 = scmp.ne.s32.totalorder %s64, %s66
    %p73 = scmp.eq.s32.totalorder %s14, 3
    %p74 = por %p72, %p73
    %p75 = scmp.ne.s32.totalorder %s66, %s67
    %p76 = scmp.eq.s32.totalorder %s14, 0
    %p77 = por %p75, %p76
    %p78 = scmp.ne.s32.totalorder %s66, %s67
    %p79 = scmp.eq.s32.totalorder %s15, 3
    %p80 = por %p78, %p79
    %p82 = scmp.ne.s32.totalorder %s67, %s81
    %p83 = scmp.eq.s32.totalorder %s15, 0
    %p84 = por %p82, %p83
    %s85 = ssub.s32 %s9, %s16
    %p86 = scmp.eq.s32.totalorder %s85, 0
    %s88 = sadd.s32 %s87, 1
    %s89 = scalar_select %p86, %s87, %s88
    %p92 = pneg %p86
    %p93 = scmp.eq.s32.totalorder %s9, 3
    %p94 = por %p92, %p93
    %p95 = scmp.ne.s32.totalorder %s87, %s90
    %p96 = scmp.eq.s32.totalorder %s9, 0
    %p97 = por %p95, %p96
    %p98 = scmp.ne.s32.totalorder %s87, %s90
    %p99 = scmp.eq.s32.totalorder %s14, 3
    %p100 = por %p98, %p99
    %p101 = scmp.ne.s32.totalorder %s90, %s91
    %p102 = scmp.eq.s32.totalorder %s14, 0
    %p103 = por %p101, %p102
    %p104 = scmp.ne.s32.totalorder %s90, %s91
    %p105 = scmp.eq.s32.totalorder %s15, 3
    %p106 = por %p104, %p105
    %p108 = scmp.ne.s32.totalorder %s91, %s107
    %p109 = scmp.eq.s32.totalorder %s15, 0
    %p110 = por %p108, %p109
    %p111 = scmp.le.s32.totalorder 1, %s9
    %p112 = scmp.lt.s32.totalorder %s9, 5
    %p113 = pnand %p111, %p112
    %p114 = pneg %p113
    // Predicated region
    $region9: #{bottleneck_forward.6} parent=5 // pred_check
      _
    $region10: #{bottleneck_forward.6} parent=5 // pred_check_branch
      %116 = sbr.rel (%p113) target = $region12
    $region11: #{bottleneck_forward.6} parent=5 // pred_region
      %s117 = ssub.s32 %s9, 1
      // Predicated region
      $region13: #{bottleneck_forward.6} parent=11 // pred_check
        %p118 = pneg %p56
      $region14: #{bottleneck_forward.6} parent=11 // pred_check_branch
        %120 = sbr.rel (%p118) target = $region16
      $region15: #{bottleneck_forward.6} parent=11 // pred_region
        _
      $region16: #{bottleneck_forward.6} parent=11 // pred_fallthru
        _
      // Predicated region
      $region17: #{bottleneck_forward.6} parent=11 // pred_check
        %p121 = pneg %p77
      $region18: #{bottleneck_forward.6} parent=11 // pred_check_branch
        %123 = sbr.rel (%p121) target = $region20
      $region19: #{bottleneck_forward.6} parent=11 // pred_region
        _
      $region20: #{bottleneck_forward.6} parent=11 // pred_fallthru
        _
    $region12: #{bottleneck_forward.6} parent=5 // pred_fallthru
      _
    %p124 = scmp.lt.s32.totalorder %s9, 4
    // Predicated region
    $region21: #{bottleneck_forward.6} parent=5 // pred_check
      %p125 = pneg %p124
    $region22: #{bottleneck_forward.6} parent=5 // pred_check_branch
      %127 = sbr.rel (%p125) target = $region24
    $region23: #{bottleneck_forward.6} parent=5 // pred_region
      // Predicated region
      $region25: #{bottleneck_forward.6} parent=23 // pred_check
        %p128 = pneg %p29
      $region26: #{bottleneck_forward.6} parent=23 // pred_check_branch
        %130 = sbr.rel (%p128) target = $region28
      $region27: #{bottleneck_forward.6} parent=23 // pred_region
        %s131 = smul.u32 16, %s9
        %p132 = scmp.lt.s32.totalorder %s131, 63
        %s133 = scalar_select %p132, %s131, 63
        %s134 = smul.addr %s133, 5
        %s135 = smul.addr %s134, 4
        %s136 = scalar_lea.vmem %s0, %s135
        %s137 = smul.u32 16, %s9
      $region28: #{bottleneck_forward.6} parent=23 // pred_fallthru
        _
    $region24: #{bottleneck_forward.6} parent=5 // pred_fallthru
      _
    %p138 = scmp.le.s32.totalorder 1, %s9
    %p139 = scmp.lt.s32.totalorder %s9, 5
    %p140 = pnand %p138, %p139
    %p141 = pneg %p140
    // Predicated region
    $region29: #{bottleneck_forward.6} parent=5 // pred_check
      _
    $region30: #{bottleneck_forward.6} parent=5 // pred_check_branch
      %143 = sbr.rel (%p140) target = $region32
    $region31: #{bottleneck_forward.6} parent=5 // pred_region
      %s144 = ssub.s32 %s9, 1
      %s145 = smul.u32 16, %s14
      %p146 = scmp.lt.s32.totalorder %s145, 63
      %s147 = scalar_select %p146, %s145, 63
      %s148 = smul.addr %s147, 5
      %s149 = smul.addr %s148, 4
      %s150 = scalar_lea.vmem %s0, %s149
      %p151 = pneg %p35
      %p152 = pneg %p32
      %p153 = pneg %p56
      %p154 = pneg %p53
      %p155 = pneg %p77
      %p156 = pneg %p74
      %p157 = pneg %p103
      %p158 = pneg %p100
      %s159 = smul.u32 16, %s14
      %p160 = scmp.lt.s32.totalorder %s159, 63
      %s161 = scalar_select %p160, %s159, 63
      %s162 = smul.addr %s161, 8
      %s163 = scalar_lea.vmem %s3, %s162
      %s164 = smul.u32 16, %s14
      %p165 = scmp.lt.s32.totalorder %s164, 63
      %s166 = scalar_select %p165, %s164, 63
      %s167 = smul.addr %s166, 5
      %s168 = smul.addr %s167, 4
      %s169 = scalar_lea.vmem %s0, %s168
      %s170 = smul.u32 16, %s14
      %s171 = smul.u32 16, %s14
      %p172 = scmp.lt.s32.totalorder %s171, 63
      %s173 = scalar_select %p172, %s171, 63
      %s174 = smul.addr %s173, 8
      %s175 = scalar_lea.vmem %s3, %s174
      %s176 = smul.u32 16, %s14
      %v178 = vld [vmem:[%s169] sm:$0xff]
      %v179 = vld [vmem:[%s169 + $0x8] sm:$0xff]
      %v180 = vld [vmem:[%s169 + $0x10] sm:$0xf]
      %v181 = vld [vmem:[%s169 + $0x14] sm:$0xff]
      %v182 = vld [vmem:[%s169 + $0x1c] sm:$0xff]
      %v183 = vld [vmem:[%s169 + $0x24] sm:$0xf]
      %v184 = vld [vmem:[%s169 + $0x28] sm:$0xff]
      %v185 = vld [vmem:[%s169 + $0x30] sm:$0xff]
      %v186 = vld [vmem:[%s169 + $0x38] sm:$0xf]
      %v187 = vld [vmem:[%s169 + $0x3c] sm:$0xff]
      %v188 = vld [vmem:[%s169 + $0x44] sm:$0xff]
      %v189 = vld [vmem:[%s169 + $0x4c] sm:$0xf]
      %v190 = vld [vmem:[%s169 + $0x50] sm:$0xff]
      %v191 = vld [vmem:[%s169 + $0x58] sm:$0xff]
      %v192 = vld [vmem:[%s169 + $0x60] sm:$0xf]
      %v193 = vld [vmem:[%s169 + $0x64] sm:$0xff]
      %v194 = vld [vmem:[%s169 + $0x6c] sm:$0xff]
      %v195 = vld [vmem:[%s169 + $0x74] sm:$0xf]
      %v196 = vld [vmem:[%s169 + $0x78] sm:$0xff]
      %v197 = vld [vmem:[%s169 + $0x80] sm:$0xff]
      %v198 = vld [vmem:[%s169 + $0x88] sm:$0xf]
      %v199 = vld [vmem:[%s169 + $0x8c] sm:$0xff]
      %v200 = vld [vmem:[%s169 + $0x94] sm:$0xff]
      %v201 = vld [vmem:[%s169 + $0x9c] sm:$0xf]
      %v202 = vld [vmem:[%s169 + $0xa0] sm:$0xff]
      %v203 = vld [vmem:[%s169 + $0xa8] sm:$0xff]
      %v204 = vld [vmem:[%s169 + $0xb0] sm:$0xf]
      %v205 = vld [vmem:[%s169 + $0xb4] sm:$0xff]
      %v206 = vld [vmem:[%s169 + $0xbc] sm:$0xff]
      %v207 = vld [vmem:[%s169 + $0xc4] sm:$0xf]
      %v208 = vld [vmem:[%s169 + $0xc8] sm:$0xff]
      %v209 = vld [vmem:[%s169 + $0xd0] sm:$0xff]
      %v210 = vld [vmem:[%s169 + $0xd8] sm:$0xf]
      %v211 = vld [vmem:[%s169 + $0xdc] sm:$0xff]
      %v212 = vld [vmem:[%s169 + $0xe4] sm:$0xff]
      %v213 = vld [vmem:[%s169 + $0xec] sm:$0xf]
      %v214 = vld [vmem:[%s169 + $0xf0] sm:$0xff]
      %v215 = vld [vmem:[%s169 + $0xf8] sm:$0xff]
      %v216 = vld [vmem:[%s169 + $0x100] sm:$0xf]
      %v217 = vld [vmem:[%s169 + $0x104] sm:$0xff]
      %v218 = vld [vmem:[%s169 + $0x10c] sm:$0xff]
      %v219 = vld [vmem:[%s169 + $0x114] sm:$0xf]
      %v220 = vld [vmem:[%s169 + $0x118] sm:$0xff]
      %v221 = vld [vmem:[%s169 + $0x120] sm:$0xff]
      %v222 = vld [vmem:[%s169 + $0x128] sm:$0xf]
      %v223 = vld [vmem:[%s169 + $0x12c] sm:$0xff]
      %v224 = vld [vmem:[%s169 + $0x134] sm:$0xff]
      %v225 = vld [vmem:[%s169 + $0x13c] sm:$0xf]
      %v226 = vld [vmem:[%s1] sm:$0xf]
      %v227 = vld [vmem:[%s1 + $0x4] sm:$0xf]
      %v228 = vld [vmem:[%s1 + $0x8] sm:$0xf]
      %v229 = vld [vmem:[%s1 + $0xc] sm:$0xf]
      %v230 = vld [vmem:[%s1 + $0x10] sm:$0xf]
      %v231 = vld [vmem:[%s1 + $0x14] sm:$0xf]
      %v232 = vld [vmem:[%s1 + $0x18] sm:$0xf]
      %v233 = vld [vmem:[%s1 + $0x1c] sm:$0xf]
      %v234 = vld [vmem:[%s1 + $0x20] sm:$0xf]
      %v235 = vld [vmem:[%s1 + $0x24] sm:$0xf]
      %v236 = vld [vmem:[%s1 + $0x28] sm:$0xf]
      %v237 = vld [vmem:[%s1 + $0x2c] sm:$0xf]
      %v238 = vld [vmem:[%s1 + $0x30] sm:$0xf]
      %v239 = vld [vmem:[%s1 + $0x34] sm:$0xf]
      %v240 = vld [vmem:[%s1 + $0x38] sm:$0xf]
      %v241 = vld [vmem:[%s1 + $0x3c] sm:$0xf]
      %v242 = vld [vmem:[%s1 + $0x40] sm:$0xf]
      %v243 = vld [vmem:[%s1 + $0x44] sm:$0xf]
      %v244 = vld [vmem:[%s1 + $0x48] sm:$0xf]
      %v245 = vld [vmem:[%s1 + $0x4c] sm:$0xf]
      %v246 = vld [vmem:[%s1 + $0x50] sm:$0xf]
      %v247 = vld [vmem:[%s1 + $0x54] sm:$0xf]
      %v248 = vld [vmem:[%s1 + $0x58] sm:$0xf]
      %v249 = vld [vmem:[%s1 + $0x5c] sm:$0xf]
      %v250 = vld [vmem:[%s1 + $0x60] sm:$0xf]
      %v251 = vld [vmem:[%s1 + $0x64] sm:$0xf]
      %v252 = vld [vmem:[%s1 + $0x68] sm:$0xf]
      %v253 = vld [vmem:[%s1 + $0x6c] sm:$0xf]
      %v254 = vld [vmem:[%s1 + $0x70] sm:$0xf]
      %v255 = vld [vmem:[%s1 + $0x74] sm:$0xf]
      %v256 = vld [vmem:[%s1 + $0x78] sm:$0xf]
      %v257 = vld [vmem:[%s1 + $0x7c] sm:$0xf]
      %v258 = vld [vmem:[%s1 + $0x80] sm:$0xf]
      %v259 = vld [vmem:[%s1 + $0x84] sm:$0xf]
      %v260 = vld [vmem:[%s1 + $0x88] sm:$0xf]
      %v261 = vld [vmem:[%s1 + $0x8c] sm:$0xf]
      %v262 = vld [vmem:[%s1 + $0x90] sm:$0xf]
      %v263 = vld [vmem:[%s1 + $0x94] sm:$0xf]
      %v264 = vld [vmem:[%s1 + $0x98] sm:$0xf]
      %v265 = vld [vmem:[%s1 + $0x9c] sm:$0xf]
      %v266 = vld [vmem:[%s1 + $0xa0] sm:$0xf]
      %v267 = vld [vmem:[%s1 + $0xa4] sm:$0xf]
      %v268 = vld [vmem:[%s1 + $0xa8] sm:$0xf]
      %v269 = vld [vmem:[%s1 + $0xac] sm:$0xf]
      %v270 = vld [vmem:[%s1 + $0xb0] sm:$0xf]
      %v271 = vld [vmem:[%s1 + $0xb4] sm:$0xf]
      %v272 = vld [vmem:[%s1 + $0xb8] sm:$0xf]
      %v273 = vld [vmem:[%s1 + $0xbc] sm:$0xf]
      %v274 = vld [vmem:[%s1 + $0xc0] sm:$0xf]
      %v275 = vld [vmem:[%s1 + $0xc4] sm:$0xf]
      %v276 = vld [vmem:[%s1 + $0xc8] sm:$0xf]
      %v277 = vld [vmem:[%s1 + $0xcc] sm:$0xf]
      %v278 = vld [vmem:[%s1 + $0xd0] sm:$0xf]
      %v279 = vld [vmem:[%s1 + $0xd4] sm:$0xf]
      %v280 = vld [vmem:[%s1 + $0xd8] sm:$0xf]
      %v281 = vld [vmem:[%s1 + $0xdc] sm:$0xf]
      %v282 = vld [vmem:[%s1 + $0xe0] sm:$0xf]
      %v283 = vld [vmem:[%s1 + $0xe4] sm:$0xf]
      %v284 = vld [vmem:[%s1 + $0xe8] sm:$0xf]
      %v285 = vld [vmem:[%s1 + $0xec] sm:$0xf]
      %v286 = vld [vmem:[%s1 + $0xf0] sm:$0xf]
      %v287 = vld [vmem:[%s1 + $0xf4] sm:$0xf]
      %v288 = vld [vmem:[%s1 + $0xf8] sm:$0xf]
      %v289 = vld [vmem:[%s1 + $0xfc] sm:$0xf]
      %v290 = vld [vmem:[%s1 + $0x100] sm:$0xf]
      %v291 = vld [vmem:[%s1 + $0x104] sm:$0xf]
      %v292 = vld [vmem:[%s1 + $0x108] sm:$0xf]
      %v293 = vld [vmem:[%s1 + $0x10c] sm:$0xf]
      %v294 = vld [vmem:[%s1 + $0x110] sm:$0xf]
      %v295 = vld [vmem:[%s1 + $0x114] sm:$0xf]
      %v296 = vld [vmem:[%s1 + $0x118] sm:$0xf]
      %v297 = vld [vmem:[%s1 + $0x11c] sm:$0xf]
      %v298 = vld [vmem:[%s1 + $0x120] sm:$0xf]
      %v299 = vld [vmem:[%s1 + $0x124] sm:$0xf]
      %v300 = vld [vmem:[%s1 + $0x128] sm:$0xf]
      %v301 = vld [vmem:[%s1 + $0x12c] sm:$0xf]
      %v302 = vld [vmem:[%s1 + $0x130] sm:$0xf]
      %v303 = vld [vmem:[%s1 + $0x134] sm:$0xf]
      %v304 = vld [vmem:[%s1 + $0x138] sm:$0xf]
      %v305 = vld [vmem:[%s1 + $0x13c] sm:$0xf]
      %v306 = vld [vmem:[%s2] sm:$0x1]
      %v308 = vlaneseq
      %v309 = vshrl.u32 %v308, 7
      %v310 = vsub.s32 0, %v309
      %v311 = vrot.slane %v306, %v310
      %v361 = vunpack.c.l.b16 %v178
      %v362 = vunpack.c.h.b16 %v178
      %v363 = vunpack.c.l.b16 %v179
      %v364 = vunpack.c.h.b16 %v179
      %v365 = vunpack.c.l.b16 %v180
      %v366 = vunpack.c.l.b16 %v181
      %v367 = vunpack.c.h.b16 %v181
      %v368 = vunpack.c.l.b16 %v182
      %v369 = vunpack.c.h.b16 %v182
      %v370 = vunpack.c.l.b16 %v183
      %v371 = vunpack.c.l.b16 %v184
      %v372 = vunpack.c.h.b16 %v184
      %v373 = vunpack.c.l.b16 %v185
      %v374 = vunpack.c.h.b16 %v185
      %v375 = vunpack.c.l.b16 %v186
      %v376 = vunpack.c.l.b16 %v187
      %v377 = vunpack.c.h.b16 %v187
      %v378 = vunpack.c.l.b16 %v188
      %v379 = vunpack.c.h.b16 %v188
      %v380 = vunpack.c.l.b16 %v189
      %v381 = vunpack.c.l.b16 %v190
      %v382 = vunpack.c.h.b16 %v190
      %v383 = vunpack.c.l.b16 %v191
      %v384 = vunpack.c.h.b16 %v191
      %v385 = vunpack.c.l.b16 %v192
      %v386 = vunpack.c.l.b16 %v193
      %v387 = vunpack.c.h.b16 %v193
      %v388 = vunpack.c.l.b16 %v194
      %v389 = vunpack.c.h.b16 %v194
      %v390 = vunpack.c.l.b16 %v195
      %v391 = vunpack.c.l.b16 %v196
      %v392 = vunpack.c.h.b16 %v196
      %v393 = vunpack.c.l.b16 %v197
      %v394 = vunpack.c.h.b16 %v197
      %v395 = vunpack.c.l.b16 %v198
      %v396 = vunpack.c.l.b16 %v199
      %v397 = vunpack.c.h.b16 %v199
      %v398 = vunpack.c.l.b16 %v200
      %v399 = vunpack.c.h.b16 %v200
      %v400 = vunpack.c.l.b16 %v201
      %v401 = vunpack.c.l.b16 %v202
      %v402 = vunpack.c.h.b16 %v202
      %v403 = vunpack.c.l.b16 %v203
      %v404 = vunpack.c.h.b16 %v203
      %v405 = vunpack.c.l.b16 %v204
      %v406 = vunpack.c.l.b16 %v205
      %v407 = vunpack.c.h.b16 %v205
      %v408 = vunpack.c.l.b16 %v206
      %v409 = vunpack.c.h.b16 %v206
      %v410 = vunpack.c.l.b16 %v207
      %v411 = vunpack.c.l.b16 %v208
      %v412 = vunpack.c.h.b16 %v208
      %v413 = vunpack.c.l.b16 %v209
      %v414 = vunpack.c.h.b16 %v209
      %v415 = vunpack.c.l.b16 %v210
      %v416 = vunpack.c.l.b16 %v211
      %v417 = vunpack.c.h.b16 %v211
      %v418 = vunpack.c.l.b16 %v212
      %v419 = vunpack.c.h.b16 %v212
      %v420 = vunpack.c.l.b16 %v213
      %v421 = vunpack.c.l.b16 %v214
      %v422 = vunpack.c.h.b16 %v214
      %v423 = vunpack.c.l.b16 %v215
      %v424 = vunpack.c.h.b16 %v215
      %v425 = vunpack.c.l.b16 %v216
      %v426 = vunpack.c.l.b16 %v217
      %v427 = vunpack.c.h.b16 %v217
      %v428 = vunpack.c.l.b16 %v218
      %v429 = vunpack.c.h.b16 %v218
      %v430 = vunpack.c.l.b16 %v219
      %v431 = vunpack.c.l.b16 %v220
      %v432 = vunpack.c.h.b16 %v220
      %v433 = vunpack.c.l.b16 %v221
      %v434 = vunpack.c.h.b16 %v221
      %v435 = vunpack.c.l.b16 %v222
      %v436 = vunpack.c.l.b16 %v223
      %v437 = vunpack.c.h.b16 %v223
      %v438 = vunpack.c.l.b16 %v224
      %v439 = vunpack.c.h.b16 %v224
      %v440 = vunpack.c.l.b16 %v225
      %v441 = vpack.c.b16 %v366, %v361
      %v442 = vpack.c.b16 %v367, %v362
      %v443 = vpack.c.b16 %v368, %v363
      %v444 = vpack.c.b16 %v369, %v364
      %v445 = vpack.c.b16 %v370, %v365
      %v446 = vpack.c.b16 %v376, %v371
      %v447 = vpack.c.b16 %v377, %v372
      %v448 = vpack.c.b16 %v378, %v373
      %v449 = vpack.c.b16 %v379, %v374
      %v450 = vpack.c.b16 %v380, %v375
      %v451 = vpack.c.b16 %v386, %v381
      %v452 = vpack.c.b16 %v387, %v382
      %v453 = vpack.c.b16 %v388, %v383
      %v454 = vpack.c.b16 %v389, %v384
      %v455 = vpack.c.b16 %v390, %v385
      %v456 = vpack.c.b16 %v396, %v391
      %v457 = vpack.c.b16 %v397, %v392
      %v458 = vpack.c.b16 %v398, %v393
      %v459 = vpack.c.b16 %v399, %v394
      %v460 = vpack.c.b16 %v400, %v395
      %v461 = vpack.c.b16 %v406, %v401
      %v462 = vpack.c.b16 %v407, %v402
      %v463 = vpack.c.b16 %v408, %v403
      %v464 = vpack.c.b16 %v409, %v404
      %v465 = vpack.c.b16 %v410, %v405
      %v466 = vpack.c.b16 %v416, %v411
      %v467 = vpack.c.b16 %v417, %v412
      %v468 = vpack.c.b16 %v418, %v413
      %v469 = vpack.c.b16 %v419, %v414
      %v470 = vpack.c.b16 %v420, %v415
      %v471 = vpack.c.b16 %v426, %v421
      %v472 = vpack.c.b16 %v427, %v422
      %v473 = vpack.c.b16 %v428, %v423
      %v474 = vpack.c.b16 %v429, %v424
      %v475 = vpack.c.b16 %v430, %v425
      %v476 = vpack.c.b16 %v436, %v431
      %v477 = vpack.c.b16 %v437, %v432
      %v478 = vpack.c.b16 %v438, %v433
      %v479 = vpack.c.b16 %v439, %v434
      %v480 = vpack.c.b16 %v440, %v435
      %v601 = vunpack.c.l.b16 %v226
      %v602 = vunpack.c.l.b16 %v227
      %v603 = vunpack.c.l.b16 %v228
      %v604 = vunpack.c.l.b16 %v229
      %v605 = vunpack.c.l.b16 %v230
      %v606 = vunpack.c.l.b16 %v231
      %v607 = vunpack.c.l.b16 %v232
      %v608 = vunpack.c.l.b16 %v233
      %v609 = vunpack.c.l.b16 %v234
      %v610 = vunpack.c.l.b16 %v235
      %v611 = vunpack.c.l.b16 %v236
      %v612 = vunpack.c.l.b16 %v237
      %v613 = vunpack.c.l.b16 %v238
      %v614 = vunpack.c.l.b16 %v239
      %v615 = vunpack.c.l.b16 %v240
      %v616 = vunpack.c.l.b16 %v241
      %v617 = vunpack.c.l.b16 %v242
      %v618 = vunpack.c.l.b16 %v243
      %v619 = vunpack.c.l.b16 %v244
      %v620 = vunpack.c.l.b16 %v245
      %v621 = vunpack.c.l.b16 %v246
      %v622 = vunpack.c.l.b16 %v247
      %v623 = vunpack.c.l.b16 %v248
      %v624 = vunpack.c.l.b16 %v249
      %v625 = vunpack.c.l.b16 %v250
      %v626 = vunpack.c.l.b16 %v251
      %v627 = vunpack.c.l.b16 %v252
      %v628 = vunpack.c.l.b16 %v253
      %v629 = vunpack.c.l.b16 %v254
      %v630 = vunpack.c.l.b16 %v255
      %v631 = vunpack.c.l.b16 %v256
      %v632 = vunpack.c.l.b16 %v257
      %v633 = vunpack.c.l.b16 %v258
      %v634 = vunpack.c.l.b16 %v259
      %v635 = vunpack.c.l.b16 %v260
      %v636 = vunpack.c.l.b16 %v261
      %v637 = vunpack.c.l.b16 %v262
      %v638 = vunpack.c.l.b16 %v263
      %v639 = vunpack.c.l.b16 %v264
      %v640 = vunpack.c.l.b16 %v265
      %v641 = vunpack.c.l.b16 %v266
      %v642 = vunpack.c.l.b16 %v267
      %v643 = vunpack.c.l.b16 %v268
      %v644 = vunpack.c.l.b16 %v269
      %v645 = vunpack.c.l.b16 %v270
      %v646 = vunpack.c.l.b16 %v271
      %v647 = vunpack.c.l.b16 %v272
      %v648 = vunpack.c.l.b16 %v273
      %v649 = vunpack.c.l.b16 %v274
      %v650 = vunpack.c.l.b16 %v275
      %v651 = vunpack.c.l.b16 %v276
      %v652 = vunpack.c.l.b16 %v277
      %v653 = vunpack.c.l.b16 %v278
      %v654 = vunpack.c.l.b16 %v279
      %v655 = vunpack.c.l.b16 %v280
      %v656 = vunpack.c.l.b16 %v281
      %v657 = vunpack.c.l.b16 %v282
      %v658 = vunpack.c.l.b16 %v283
      %v659 = vunpack.c.l.b16 %v284
      %v660 = vunpack.c.l.b16 %v285
      %v661 = vunpack.c.l.b16 %v286
      %v662 = vunpack.c.l.b16 %v287
      %v663 = vunpack.c.l.b16 %v288
      %v664 = vunpack.c.l.b16 %v289
      %v665 = vunpack.c.l.b16 %v290
      %v666 = vunpack.c.l.b16 %v291
      %v667 = vunpack.c.l.b16 %v292
      %v668 = vunpack.c.l.b16 %v293
      %v669 = vunpack.c.l.b16 %v294
      %v670 = vunpack.c.l.b16 %v295
      %v671 = vunpack.c.l.b16 %v296
      %v672 = vunpack.c.l.b16 %v297
      %v673 = vunpack.c.l.b16 %v298
      %v674 = vunpack.c.l.b16 %v299
      %v675 = vunpack.c.l.b16 %v300
      %v676 = vunpack.c.l.b16 %v301
      %v677 = vunpack.c.l.b16 %v302
      %v678 = vunpack.c.l.b16 %v303
      %v679 = vunpack.c.l.b16 %v304
      %v680 = vunpack.c.l.b16 %v305
      %v681 = vpack.c.b16 %v602, %v601
      %v682 = vpack.c.b16 %v604, %v603
      %v683 = vpack.c.b16 %v606, %v605
      %v684 = vpack.c.b16 %v608, %v607
      %v685 = vpack.c.b16 %v610, %v609
      %v686 = vpack.c.b16 %v612, %v611
      %v687 = vpack.c.b16 %v614, %v613
      %v688 = vpack.c.b16 %v616, %v615
      %v689 = vpack.c.b16 %v618, %v617
      %v690 = vpack.c.b16 %v620, %v619
      %v691 = vpack.c.b16 %v622, %v621
      %v692 = vpack.c.b16 %v624, %v623
      %v693 = vpack.c.b16 %v626, %v625
      %v694 = vpack.c.b16 %v628, %v627
      %v695 = vpack.c.b16 %v630, %v629
      %v696 = vpack.c.b16 %v632, %v631
      %v697 = vpack.c.b16 %v634, %v633
      %v698 = vpack.c.b16 %v636, %v635
      %v699 = vpack.c.b16 %v638, %v637
      %v700 = vpack.c.b16 %v640, %v639
      %v701 = vpack.c.b16 %v642, %v641
      %v702 = vpack.c.b16 %v644, %v643
      %v703 = vpack.c.b16 %v646, %v645
      %v704 = vpack.c.b16 %v648, %v647
      %v705 = vpack.c.b16 %v650, %v649
      %v706 = vpack.c.b16 %v652, %v651
      %v707 = vpack.c.b16 %v654, %v653
      %v708 = vpack.c.b16 %v656, %v655
      %v709 = vpack.c.b16 %v658, %v657
      %v710 = vpack.c.b16 %v660, %v659
      %v711 = vpack.c.b16 %v662, %v661
      %v712 = vpack.c.b16 %v664, %v663
      %v713 = vpack.c.b16 %v666, %v665
      %v714 = vpack.c.b16 %v668, %v667
      %v715 = vpack.c.b16 %v670, %v669
      %v716 = vpack.c.b16 %v672, %v671
      %v717 = vpack.c.b16 %v674, %v673
      %v718 = vpack.c.b16 %v676, %v675
      %v719 = vpack.c.b16 %v678, %v677
      %v720 = vpack.c.b16 %v680, %v679
      %761 = vmatprep.subr.bf16.mxu0 0
      %762 = vmatpush1.bf16.msra.mxu0 %v688
      %763 = vmatprep.subr.bf16.mxu0 0
      %764 = vmatpush1.bf16.msra.mxu0 %v687
      %765 = vmatprep.subr.bf16.mxu0 0
      %766 = vmatpush1.bf16.msra.mxu0 %v686
      %767 = vmatprep.subr.bf16.mxu0 0
      %768 = vmatpush1.bf16.msra.mxu0 %v685
      %769 = vmatprep.subr.bf16.mxu0 0
      %770 = vmatpush1.bf16.msra.mxu0 %v684
      %771 = vmatprep.subr.bf16.mxu0 0
      %772 = vmatpush1.bf16.msra.mxu0 %v683
      %773 = vmatprep.subr.bf16.mxu0 0
      %774 = vmatpush1.bf16.msra.mxu0 %v682
      %775 = vmatprep.subr.bf16.mxu0 0
      %776 = vmatpush1.bf16.msra.mxu0 %v681
      %777 = vmatprep.subr.bf16.mxu0 0
      %778 = vmatpush2.bf16.msra.mxu0 %v696
      %779 = vmatprep.subr.bf16.mxu0 0
      %780 = vmatpush2.bf16.msra.mxu0 %v695
      %781 = vmatprep.subr.bf16.mxu0 0
      %782 = vmatpush2.bf16.msra.mxu0 %v694
      %783 = vmatprep.subr.bf16.mxu0 0
      %784 = vmatpush2.bf16.msra.mxu0 %v693
      %785 = vmatprep.subr.bf16.mxu0 0
      %786 = vmatpush2.bf16.msra.mxu0 %v692
      %787 = vmatprep.subr.bf16.mxu0 0
      %788 = vmatpush2.bf16.msra.mxu0 %v691
      %789 = vmatprep.subr.bf16.mxu0 0
      %790 = vmatpush2.bf16.msra.mxu0 %v690
      %791 = vmatprep.subr.bf16.mxu0 0
      %792 = vmatpush2.bf16.msra.mxu0 %v689
      %793 = vmatprep.mubr.bf16.mxu0 %v442
      %794 = vmatmul.mubr.bf16.gmra.mxu0 %v441
      %v795 = vpop.f32.mrf.mxu0
      %v796 = vadd.f32 %v311, %v795
      %v797 = vpop.f32.mrf.mxu0
      %v798 = vpop.f32.mrf.mxu0
      %v799 = vadd.f32 %v311, %v798
      %v800 = vpop.f32.mrf.mxu0
      %801 = vmatprep.mubr.bf16.mxu0 %v447
      %802 = vmatmul.mubr.bf16.gmra.mxu0 %v446
      %v803 = vpop.f32.mrf.mxu0
      %v804 = vadd.f32 %v311, %v803
      %v805 = vpop.f32.mrf.mxu0
      %v806 = vpop.f32.mrf.mxu0
      %v807 = vadd.f32 %v311, %v806
      %v808 = vpop.f32.mrf.mxu0
      %809 = vmatprep.mubr.bf16.mxu0 %v452
      %810 = vmatmul.mubr.bf16.gmra.mxu0 %v451
      %v811 = vpop.f32.mrf.mxu0
      %v812 = vadd.f32 %v311, %v811
      %v813 = vpop.f32.mrf.mxu0
      %v814 = vpop.f32.mrf.mxu0
      %v815 = vadd.f32 %v311, %v814
      %v816 = vpop.f32.mrf.mxu0
      %817 = vmatprep.mubr.bf16.mxu0 %v457
      %818 = vmatmul.mubr.bf16.gmra.mxu0 %v456
      %v819 = vpop.f32.mrf.mxu0
      %v820 = vadd.f32 %v311, %v819
      %v821 = vpop.f32.mrf.mxu0
      %v822 = vpop.f32.mrf.mxu0
      %v823 = vadd.f32 %v311, %v822
      %v824 = vpop.f32.mrf.mxu0
      %825 = vmatprep.mubr.bf16.mxu0 %v462
      %826 = vmatmul.mubr.bf16.gmra.mxu0 %v461
      %v827 = vpop.f32.mrf.mxu0
      %v828 = vadd.f32 %v311, %v827
      %v829 = vpop.f32.mrf.mxu0
      %v830 = vpop.f32.mrf.mxu0
      %v831 = vadd.f32 %v311, %v830
      %v832 = vpop.f32.mrf.mxu0
      %833 = vmatprep.mubr.bf16.mxu0 %v467
      %834 = vmatmul.mubr.bf16.gmra.mxu0 %v466
      %v835 = vpop.f32.mrf.mxu0
      %v836 = vadd.f32 %v311, %v835
      %v837 = vpop.f32.mrf.mxu0
      %v838 = vpop.f32.mrf.mxu0
      %v839 = vadd.f32 %v311, %v838
      %v840 = vpop.f32.mrf.mxu0
      %841 = vmatprep.mubr.bf16.mxu0 %v472
      %842 = vmatmul.mubr.bf16.gmra.mxu0 %v471
      %v843 = vpop.f32.mrf.mxu0
      %v844 = vadd.f32 %v311, %v843
      %v845 = vpop.f32.mrf.mxu0
      %v846 = vpop.f32.mrf.mxu0
      %v847 = vadd.f32 %v311, %v846
      %v848 = vpop.f32.mrf.mxu0
      %849 = vmatprep.mubr.bf16.mxu0 %v477
      %850 = vmatmul.mubr.bf16.gmra.mxu0 %v476
      %v851 = vpop.f32.mrf.mxu0
      %v852 = vadd.f32 %v311, %v851
      %v853 = vpop.f32.mrf.mxu0
      %v854 = vpop.f32.mrf.mxu0
      %v855 = vadd.f32 %v311, %v854
      %v856 = vpop.f32.mrf.mxu0
      %857 = vdwg.mxu0
      %858 = vmatprep.subr.bf16.mxu0 0
      %859 = vmatpush1.bf16.msra.mxu0 %v704
      %860 = vmatprep.subr.bf16.mxu0 0
      %861 = vmatpush1.bf16.msra.mxu0 %v703
      %862 = vmatprep.subr.bf16.mxu0 0
      %863 = vmatpush1.bf16.msra.mxu0 %v702
      %864 = vmatprep.subr.bf16.mxu0 0
      %865 = vmatpush1.bf16.msra.mxu0 %v701
      %866 = vmatprep.subr.bf16.mxu0 0
      %867 = vmatpush1.bf16.msra.mxu0 %v700
      %868 = vmatprep.subr.bf16.mxu0 0
      %869 = vmatpush1.bf16.msra.mxu0 %v699
      %870 = vmatprep.subr.bf16.mxu0 0
      %871 = vmatpush1.bf16.msra.mxu0 %v698
      %872 = vmatprep.subr.bf16.mxu0 0
      %873 = vmatpush1.bf16.msra.mxu0 %v697
      %874 = vmatprep.subr.bf16.mxu0 0
      %875 = vmatpush2.bf16.msra.mxu0 %v712
      %876 = vmatprep.subr.bf16.mxu0 0
      %877 = vmatpush2.bf16.msra.mxu0 %v711
      %878 = vmatprep.subr.bf16.mxu0 0
      %879 = vmatpush2.bf16.msra.mxu0 %v710
      %880 = vmatprep.subr.bf16.mxu0 0
      %881 = vmatpush2.bf16.msra.mxu0 %v709
      %882 = vmatprep.subr.bf16.mxu0 0
      %883 = vmatpush2.bf16.msra.mxu0 %v708
      %884 = vmatprep.subr.bf16.mxu0 0
      %885 = vmatpush2.bf16.msra.mxu0 %v707
      %886 = vmatprep.subr.bf16.mxu0 0
      %887 = vmatpush2.bf16.msra.mxu0 %v706
      %888 = vmatprep.subr.bf16.mxu0 0
      %889 = vmatpush2.bf16.msra.mxu0 %v705
      %890 = vmatprep.mubr.bf16.mxu0 %v444
      %891 = vmatmul.mubr.bf16.gmra.mxu0 %v443
      %v892 = vpop.f32.mrf.mxu0
      %v893 = vadd.f32 %v796, %v892
      %v894 = vpop.f32.mrf.mxu0
      %v895 = vpop.f32.mrf.mxu0
      %v896 = vadd.f32 %v799, %v895
      %v897 = vpop.f32.mrf.mxu0
      %898 = vmatprep.mubr.bf16.mxu0 %v449
      %899 = vmatmul.mubr.bf16.gmra.mxu0 %v448
      %v900 = vpop.f32.mrf.mxu0
      %v901 = vadd.f32 %v804, %v900
      %v902 = vpop.f32.mrf.mxu0
      %v903 = vpop.f32.mrf.mxu0
      %v904 = vadd.f32 %v807, %v903
      %v905 = vpop.f32.mrf.mxu0
      %906 = vmatprep.mubr.bf16.mxu0 %v454
      %907 = vmatmul.mubr.bf16.gmra.mxu0 %v453
      %v908 = vpop.f32.mrf.mxu0
      %v909 = vadd.f32 %v812, %v908
      %v910 = vpop.f32.mrf.mxu0
      %v911 = vpop.f32.mrf.mxu0
      %v912 = vadd.f32 %v815, %v911
      %v913 = vpop.f32.mrf.mxu0
      %914 = vmatprep.mubr.bf16.mxu0 %v459
      %915 = vmatmul.mubr.bf16.gmra.mxu0 %v458
      %v916 = vpop.f32.mrf.mxu0
      %v917 = vadd.f32 %v820, %v916
      %v918 = vpop.f32.mrf.mxu0
      %v919 = vpop.f32.mrf.mxu0
      %v920 = vadd.f32 %v823, %v919
      %v921 = vpop.f32.mrf.mxu0
      %922 = vmatprep.mubr.bf16.mxu0 %v464
      %923 = vmatmul.mubr.bf16.gmra.mxu0 %v463
      %v924 = vpop.f32.mrf.mxu0
      %v925 = vadd.f32 %v828, %v924
      %v926 = vpop.f32.mrf.mxu0
      %v927 = vpop.f32.mrf.mxu0
      %v928 = vadd.f32 %v831, %v927
      %v929 = vpop.f32.mrf.mxu0
      %930 = vmatprep.mubr.bf16.mxu0 %v469
      %931 = vmatmul.mubr.bf16.gmra.mxu0 %v468
      %v932 = vpop.f32.mrf.mxu0
      %v933 = vadd.f32 %v836, %v932
      %v934 = vpop.f32.mrf.mxu0
      %v935 = vpop.f32.mrf.mxu0
      %v936 = vadd.f32 %v839, %v935
      %v937 = vpop.f32.mrf.mxu0
      %938 = vmatprep.mubr.bf16.mxu0 %v474
      %939 = vmatmul.mubr.bf16.gmra.mxu0 %v473
      %v940 = vpop.f32.mrf.mxu0
      %v941 = vadd.f32 %v844, %v940
      %v942 = vpop.f32.mrf.mxu0
      %v943 = vpop.f32.mrf.mxu0
      %v944 = vadd.f32 %v847, %v943
      %v945 = vpop.f32.mrf.mxu0
      %946 = vmatprep.mubr.bf16.mxu0 %v479
      %947 = vmatmul.mubr.bf16.gmra.mxu0 %v478
      %v948 = vpop.f32.mrf.mxu0
      %v949 = vadd.f32 %v852, %v948
      %v950 = vpop.f32.mrf.mxu0
      %v951 = vpop.f32.mrf.mxu0
      %v952 = vadd.f32 %v855, %v951
      %v953 = vpop.f32.mrf.mxu0
      %954 = vdwg.mxu0
      %955 = vmatprep.subr.bf16.mxu0 0
      %956 = vmatpush1.bf16.msra.mxu0 %v720
      %957 = vmatprep.subr.bf16.mxu0 0
      %958 = vmatpush1.bf16.msra.mxu0 %v719
      %959 = vmatprep.subr.bf16.mxu0 0
      %960 = vmatpush1.bf16.msra.mxu0 %v718
      %961 = vmatprep.subr.bf16.mxu0 0
      %962 = vmatpush1.bf16.msra.mxu0 %v717
      %963 = vmatprep.subr.bf16.mxu0 0
      %964 = vmatpush1.bf16.msra.mxu0 %v716
      %965 = vmatprep.subr.bf16.mxu0 0
      %966 = vmatpush1.bf16.msra.mxu0 %v715
      %967 = vmatprep.subr.bf16.mxu0 0
      %968 = vmatpush1.bf16.msra.mxu0 %v714
      %969 = vmatprep.subr.bf16.mxu0 0
      %970 = vmatpush1.bf16.msra.mxu0 %v713
      %971 = vmatprep.subr.bf16.mxu0 0
      %972 = vmatpush2.bf16.msra.mxu0 0
      %973 = vmatprep.subr.bf16.mxu0 0
      %974 = vmatpush2.bf16.msra.mxu0 0
      %975 = vmatprep.subr.bf16.mxu0 0
      %976 = vmatpush2.bf16.msra.mxu0 0
      %977 = vmatprep.subr.bf16.mxu0 0
      %978 = vmatpush2.bf16.msra.mxu0 0
      %979 = vmatprep.subr.bf16.mxu0 0
      %980 = vmatpush2.bf16.msra.mxu0 0
      %981 = vmatprep.subr.bf16.mxu0 0
      %982 = vmatpush2.bf16.msra.mxu0 0
      %983 = vmatprep.subr.bf16.mxu0 0
      %984 = vmatpush2.bf16.msra.mxu0 0
      %985 = vmatprep.subr.bf16.mxu0 0
      %986 = vmatpush2.bf16.msra.mxu0 0
      %987 = vmatprep.mubr.bf16.mxu0 0
      %988 = vmatmul.mubr.bf16.gmra.mxu0 %v445
      %v989 = vpop.f32.mrf.mxu0
      %v990 = vadd.f32 %v893, %v989
      %v991 = vpop.f32.mrf.mxu0
      %v992 = vpop.f32.mrf.mxu0
      %v993 = vadd.f32 %v896, %v992
      %v994 = vpop.f32.mrf.mxu0
      %995 = vmatprep.mubr.bf16.mxu0 0
      %996 = vmatmul.mubr.bf16.gmra.mxu0 %v450
      %v997 = vpop.f32.mrf.mxu0
      %v998 = vadd.f32 %v901, %v997
      %v999 = vpop.f32.mrf.mxu0
      %v1000 = vpop.f32.mrf.mxu0
      %v1001 = vadd.f32 %v904, %v1000
      %v1002 = vpop.f32.mrf.mxu0
      %1003 = vmatprep.mubr.bf16.mxu0 0
      %1004 = vmatmul.mubr.bf16.gmra.mxu0 %v455
      %v1005 = vpop.f32.mrf.mxu0
      %v1006 = vadd.f32 %v909, %v1005
      %v1007 = vpop.f32.mrf.mxu0
      %v1008 = vpop.f32.mrf.mxu0
      %v1009 = vadd.f32 %v912, %v1008
      %v1010 = vpop.f32.mrf.mxu0
      %1011 = vmatprep.mubr.bf16.mxu0 0
      %1012 = vmatmul.mubr.bf16.gmra.mxu0 %v460
      %v1013 = vpop.f32.mrf.mxu0
      %v1014 = vadd.f32 %v917, %v1013
      %v1015 = vpop.f32.mrf.mxu0
      %v1016 = vpop.f32.mrf.mxu0
      %v1017 = vadd.f32 %v920, %v1016
      %v1018 = vpop.f32.mrf.mxu0
      %1019 = vmatprep.mubr.bf16.mxu0 0
      %1020 = vmatmul.mubr.bf16.gmra.mxu0 %v465
      %v1021 = vpop.f32.mrf.mxu0
      %v1022 = vadd.f32 %v925, %v1021
      %v1023 = vpop.f32.mrf.mxu0
      %v1024 = vpop.f32.mrf.mxu0
      %v1025 = vadd.f32 %v928, %v1024
      %v1026 = vpop.f32.mrf.mxu0
      %1027 = vmatprep.mubr.bf16.mxu0 0
      %1028 = vmatmul.mubr.bf16.gmra.mxu0 %v470
      %v1029 = vpop.f32.mrf.mxu0
      %v1030 = vadd.f32 %v933, %v1029
      %v1031 = vpop.f32.mrf.mxu0
      %v1032 = vpop.f32.mrf.mxu0
      %v1033 = vadd.f32 %v936, %v1032
      %v1034 = vpop.f32.mrf.mxu0
      %1035 = vmatprep.mubr.bf16.mxu0 0
      %1036 = vmatmul.mubr.bf16.gmra.mxu0 %v475
      %v1037 = vpop.f32.mrf.mxu0
      %v1038 = vadd.f32 %v941, %v1037
      %v1039 = vpop.f32.mrf.mxu0
      %v1040 = vpop.f32.mrf.mxu0
      %v1041 = vadd.f32 %v944, %v1040
      %v1042 = vpop.f32.mrf.mxu0
      %1043 = vmatprep.mubr.bf16.mxu0 0
      %1044 = vmatmul.mubr.bf16.gmra.mxu0 %v480
      %v1045 = vpop.f32.mrf.mxu0
      %v1046 = vadd.f32 %v949, %v1045
      %v1047 = vpop.f32.mrf.mxu0
      %v1048 = vpop.f32.mrf.mxu0
      %v1049 = vadd.f32 %v952, %v1048
      %v1050 = vpop.f32.mrf.mxu0
      %1051 = vdwg.mxu0
      %1052 = vst [vmem:[%s175] sm:$0xff] %v990
      %1053 = vst [vmem:[%s175 + $0x8] sm:$0xff] %v993
      %1054 = vst [vmem:[%s175 + $0x10] sm:$0xff] %v998
      %1055 = vst [vmem:[%s175 + $0x18] sm:$0xff] %v1001
      %1056 = vst [vmem:[%s175 + $0x20] sm:$0xff] %v1006
      %1057 = vst [vmem:[%s175 + $0x28] sm:$0xff] %v1009
      %1058 = vst [vmem:[%s175 + $0x30] sm:$0xff] %v1014
      %1059 = vst [vmem:[%s175 + $0x38] sm:$0xff] %v1017
      %1060 = vst [vmem:[%s175 + $0x40] sm:$0xff] %v1022
      %1061 = vst [vmem:[%s175 + $0x48] sm:$0xff] %v1025
      %1062 = vst [vmem:[%s175 + $0x50] sm:$0xff] %v1030
      %1063 = vst [vmem:[%s175 + $0x58] sm:$0xff] %v1033
      %1064 = vst [vmem:[%s175 + $0x60] sm:$0xff] %v1038
      %1065 = vst [vmem:[%s175 + $0x68] sm:$0xff] %v1041
      %1066 = vst [vmem:[%s175 + $0x70] sm:$0xff] %v1046
      %1067 = vst [vmem:[%s175 + $0x78] sm:$0xff] %v1049
      %s1068 = smul.u32 16, %s14
      %p1069 = scmp.lt.s32.totalorder %s1068, 63
      %s1070 = scalar_select %p1069, %s1068, 63
      %s1071 = smul.addr %s1070, 8
      %s1072 = scalar_lea.vmem %s3, %s1071
      // Predicated region
      $region33: #{bottleneck_forward.6} parent=31 // pred_check
        %p1073 = pneg %p100
      $region34: #{bottleneck_forward.6} parent=31 // pred_check_branch
        %1075 = sbr.rel (%p1073) target = $region36
      $region35: #{bottleneck_forward.6} parent=31 // pred_region
        %s1076 = smul.u32 16, %s14
      $region36: #{bottleneck_forward.6} parent=31 // pred_fallthru
        _
    $region32: #{bottleneck_forward.6} parent=5 // pred_fallthru
      _
    %p1077 = scmp.le.s32.totalorder 2, %s9
    // Predicated region
    $region37: #{bottleneck_forward.6} parent=5 // pred_check
      %p1078 = pneg %p1077
    $region38: #{bottleneck_forward.6} parent=5 // pred_check_branch
      %1080 = sbr.rel (%p1078) target = $region40
    $region39: #{bottleneck_forward.6} parent=5 // pred_region
      %s1081 = ssub.s32 %s9, 2
      // Predicated region
      $region41: #{bottleneck_forward.6} parent=39 // pred_check
        %p1082 = pneg %p106
      $region42: #{bottleneck_forward.6} parent=39 // pred_check_branch
        %1084 = sbr.rel (%p1082) target = $region44
      $region43: #{bottleneck_forward.6} parent=39 // pred_region
        %s1085 = smul.u32 16, %s15
        %p1086 = scmp.lt.s32.totalorder %s1085, 63
        %s1087 = scalar_select %p1086, %s1085, 63
        %s1088 = smul.addr %s1087, 8
        %s1089 = scalar_lea.vmem %s3, %s1088
      $region44: #{bottleneck_forward.6} parent=39 // pred_fallthru
        _
    $region40: #{bottleneck_forward.6} parent=5 // pred_fallthru
      _
  $region6: #{bottleneck_forward.6} parent=0 // loop_footer
    %s13 = sadd.s32 1, %s9
  $region7: #{bottleneck_forward.6} parent=0 // loop_footer_branch
    %8 = sbr.rel target = $region3
  $region8: #{bottleneck_forward.6} parent=0 // loop_exit
    _

// kernel: bottleneck_forward.7
$region0: #{bottleneck_forward.7}
  #allocation0 [shape = 'u32[]', space=smem, size = 0x4, offset = 0x4, fixed_abs, tag = 'smem constant byte address 0x4 - core index']
  #allocation1 [shape = 'u32[144,128]{1,0:T(1,128)}', space=vmem, size = 0x12000, scoped, tag = 'internal scratch']
  %s0 = inlined_call_operand.vmem [shape: bf16[512,256], index: 0, kind: input, shape index: {}]
  %s1 = inlined_call_operand.vmem [shape: bf16[256,128], index: 1, kind: input, shape index: {}]
  %s2 = inlined_call_operand.vmem [shape: f32[1,128], index: 2, kind: input, shape index: {}]
  %s3 = inlined_call_operand.vmem [shape: f32[512,128], index: 3, kind: input, shape index: {}]
  %s4 = inlined_call_operand.vmem [shape: f32[512,128], index: 4, kind: output, shape index: {}]
  %s5 = sld [smem:[#allocation0]]
  $region49: #{bottleneck_forward.7} parent=0
    _
  %s7 = ssub.s32 1, %s5
  %s8 = scalar_select 0, %s7, %s5
  loop: start=0, step=1, limit=6
  $region2: #{bottleneck_forward.7} parent=0 // loop_pre_header
    _
  $region3: #{bottleneck_forward.7} parent=0 // loop_header
    %s10 = sphi 0, %s14
    %p11 = scmp.ge.s32.totalorder %s10, 6
    %s20 = sphi 0, %s22
    %s23 = sphi 0, %s20
    %s24 = sphi 0, %s23
    %s40 = sphi 0, %s24
    %s44 = sphi 0, %s44
    %s46 = sphi 0, %s44
    %s47 = sphi 0, %s46
    %s61 = sphi 0, %s47
    %s65 = sphi 0, %s65
    %s67 = sphi 0, %s65
    %s68 = sphi 0, %s67
    %s82 = sphi 0, %s68
    %s88 = sphi 0, %s90
    %s91 = sphi 0, %s88
    %s92 = sphi 0, %s91
    %s108 = sphi 0, %s92
    %s114 = sphi 0, %s116
    %s117 = sphi 0, %s114
    %s118 = sphi 0, %s117
    %s134 = sphi 0, %s118
  $region4: #{bottleneck_forward.7} parent=0 // loop_header_branch
    %13 = sbr.rel (%p11) target = $region8
  $region5: #{bottleneck_forward.7} parent=0 // loop_body
    %s15 = ssub.s32 %s10, 1
    %s16 = ssub.s32 %s10, 2
    %s17 = sadd.s32 %s10, 1
    %s18 = ssub.s32 %s10, %s17
    %p19 = scmp.eq.s32.totalorder %s18, 0
    %s21 = sadd.s32 %s20, 1
    %s22 = scalar_select %p19, %s20, %s21
    %p25 = pneg %p19
    %p26 = scmp.eq.s32.totalorder %s10, 3
    %p27 = por %p25, %p26
    %p28 = scmp.ne.s32.totalorder %s20, %s23
    %p29 = scmp.eq.s32.totalorder %s10, 0
    %p30 = por %p28, %p29
    %p31 = scmp.ne.s32.totalorder %s20, %s23
    %p32 = scmp.eq.s32.totalorder %s15, 3
    %p33 = por %p31, %p32
    %p34 = scmp.ne.s32.totalorder %s23, %s24
    %p35 = scmp.eq.s32.totalorder %s15, 0
    %p36 = por %p34, %p35
    %p37 = scmp.ne.s32.totalorder %s23, %s24
    %p38 = scmp.eq.s32.totalorder %s16, 3
    %p39 = por %p37, %p38
    %p41 = scmp.ne.s32.totalorder %s24, %s40
    %p42 = scmp.eq.s32.totalorder %s16, 0
    %p43 = por %p41, %p42
    %s45 = sadd.s32 %s44, 1
    %p48 = scmp.eq.s32.totalorder %s10, 3
    %p49 = scmp.ne.s32.totalorder %s44, %s46
    %p50 = scmp.eq.s32.totalorder %s10, 0
    %p51 = por %p49, %p50
    %p52 = scmp.ne.s32.totalorder %s44, %s46
    %p53 = scmp.eq.s32.totalorder %s15, 3
    %p54 = por %p52, %p53
    %p55 = scmp.ne.s32.totalorder %s46, %s47
    %p56 = scmp.eq.s32.totalorder %s15, 0
    %p57 = por %p55, %p56
    %p58 = scmp.ne.s32.totalorder %s46, %s47
    %p59 = scmp.eq.s32.totalorder %s16, 3
    %p60 = por %p58, %p59
    %p62 = scmp.ne.s32.totalorder %s47, %s61
    %p63 = scmp.eq.s32.totalorder %s16, 0
    %p64 = por %p62, %p63
    %s66 = sadd.s32 %s65, 1
    %p69 = scmp.eq.s32.totalorder %s10, 3
    %p70 = scmp.ne.s32.totalorder %s65, %s67
    %p71 = scmp.eq.s32.totalorder %s10, 0
    %p72 = por %p70, %p71
    %p73 = scmp.ne.s32.totalorder %s65, %s67
    %p74 = scmp.eq.s32.totalorder %s15, 3
    %p75 = por %p73, %p74
    %p76 = scmp.ne.s32.totalorder %s67, %s68
    %p77 = scmp.eq.s32.totalorder %s15, 0
    %p78 = por %p76, %p77
    %p79 = scmp.ne.s32.totalorder %s67, %s68
    %p80 = scmp.eq.s32.totalorder %s16, 3
    %p81 = por %p79, %p80
    %p83 = scmp.ne.s32.totalorder %s68, %s82
    %p84 = scmp.eq.s32.totalorder %s16, 0
    %p85 = por %p83, %p84
    %s86 = ssub.s32 %s10, %s17
    %p87 = scmp.eq.s32.totalorder %s86, 0
    %s89 = sadd.s32 %s88, 1
    %s90 = scalar_select %p87, %s88, %s89
    %p93 = pneg %p87
    %p94 = scmp.eq.s32.totalorder %s10, 3
    %p95 = por %p93, %p94
    %p96 = scmp.ne.s32.totalorder %s88, %s91
    %p97 = scmp.eq.s32.totalorder %s10, 0
    %p98 = por %p96, %p97
    %p99 = scmp.ne.s32.totalorder %s88, %s91
    %p100 = scmp.eq.s32.totalorder %s15, 3
    %p101 = por %p99, %p100
    %p102 = scmp.ne.s32.totalorder %s91, %s92
    %p103 = scmp.eq.s32.totalorder %s15, 0
    %p104 = por %p102, %p103
    %p105 = scmp.ne.s32.totalorder %s91, %s92
    %p106 = scmp.eq.s32.totalorder %s16, 3
    %p107 = por %p105, %p106
    %p109 = scmp.ne.s32.totalorder %s92, %s108
    %p110 = scmp.eq.s32.totalorder %s16, 0
    %p111 = por %p109, %p110
    %s112 = ssub.s32 %s10, %s17
    %p113 = scmp.eq.s32.totalorder %s112, 0
    %s115 = sadd.s32 %s114, 1
    %s116 = scalar_select %p113, %s114, %s115
    %p119 = pneg %p113
    %p120 = scmp.eq.s32.totalorder %s10, 3
    %p121 = por %p119, %p120
    %p122 = scmp.ne.s32.totalorder %s114, %s117
    %p123 = scmp.eq.s32.totalorder %s10, 0
    %p124 = por %p122, %p123
    %p125 = scmp.ne.s32.totalorder %s114, %s117
    %p126 = scmp.eq.s32.totalorder %s15, 3
    %p127 = por %p125, %p126
    %p128 = scmp.ne.s32.totalorder %s117, %s118
    %p129 = scmp.eq.s32.totalorder %s15, 0
    %p130 = por %p128, %p129
    %p131 = scmp.ne.s32.totalorder %s117, %s118
    %p132 = scmp.eq.s32.totalorder %s16, 3
    %p133 = por %p131, %p132
    %p135 = scmp.ne.s32.totalorder %s118, %s134
    %p136 = scmp.eq.s32.totalorder %s16, 0
    %p137 = por %p135, %p136
    %p138 = scmp.le.s32.totalorder 1, %s10
    %p139 = scmp.lt.s32.totalorder %s10, 5
    %p140 = pnand %p138, %p139
    %p141 = pneg %p140
    // Predicated region
    $region9: #{bottleneck_forward.7} parent=5 // pred_check
      _
    $region10: #{bottleneck_forward.7} parent=5 // pred_check_branch
      %143 = sbr.rel (%p140) target = $region12
    $region11: #{bottleneck_forward.7} parent=5 // pred_region
      %s144 = ssub.s32 %s10, 1
      // Predicated region
      $region13: #{bottleneck_forward.7} parent=11 // pred_check
        %p145 = pneg %p57
      $region14: #{bottleneck_forward.7} parent=11 // pred_check_branch
        %147 = sbr.rel (%p145) target = $region16
      $region15: #{bottleneck_forward.7} parent=11 // pred_region
        _
      $region16: #{bottleneck_forward.7} parent=11 // pred_fallthru
        _
      // Predicated region
      $region17: #{bottleneck_forward.7} parent=11 // pred_check
        %p148 = pneg %p78
      $region18: #{bottleneck_forward.7} parent=11 // pred_check_branch
        %150 = sbr.rel (%p148) target = $region20
      $region19: #{bottleneck_forward.7} parent=11 // pred_region
        _
      $region20: #{bottleneck_forward.7} parent=11 // pred_fallthru
        _
    $region12: #{bottleneck_forward.7} parent=5 // pred_fallthru
      _
    %p151 = scmp.lt.s32.totalorder %s10, 4
    // Predicated region
    $region21: #{bottleneck_forward.7} parent=5 // pred_check
      %p152 = pneg %p151
    $region22: #{bottleneck_forward.7} parent=5 // pred_check_branch
      %154 = sbr.rel (%p152) target = $region24
    $region23: #{bottleneck_forward.7} parent=5 // pred_region
      // Predicated region
      $region25: #{bottleneck_forward.7} parent=23 // pred_check
        %p155 = pneg %p30
      $region26: #{bottleneck_forward.7} parent=23 // pred_check_branch
        %157 = sbr.rel (%p155) target = $region28
      $region27: #{bottleneck_forward.7} parent=23 // pred_region
        %s158 = smul.u32 16, %s10
        %p159 = scmp.lt.s32.totalorder %s158, 63
        %s160 = scalar_select %p159, %s158, 63
        %s161 = smul.addr %s160, 2
        %s162 = smul.addr %s161, 4
        %s163 = scalar_lea.vmem %s0, %s162
        %s164 = smul.u32 16, %s10
      $region28: #{bottleneck_forward.7} parent=23 // pred_fallthru
        _
      // Predicated region
      $region29: #{bottleneck_forward.7} parent=23 // pred_check
        %p165 = pneg %p98
      $region30: #{bottleneck_forward.7} parent=23 // pred_check_branch
        %167 = sbr.rel (%p165) target = $region32
      $region31: #{bottleneck_forward.7} parent=23 // pred_region
        %s168 = smul.u32 16, %s10
        %p169 = scmp.lt.s32.totalorder %s168, 63
        %s170 = scalar_select %p169, %s168, 63
        %s171 = smul.addr %s170, 8
        %s172 = scalar_lea.vmem %s3, %s171
        %s173 = smul.u32 16, %s10
      $region32: #{bottleneck_forward.7} parent=23 // pred_fallthru
        _
    $region24: #{bottleneck_forward.7} parent=5 // pred_fallthru
      _
    %p174 = scmp.le.s32.totalorder 1, %s10
    %p175 = scmp.lt.s32.totalorder %s10, 5
    %p176 = pnand %p174, %p175
    %p177 = pneg %p176
    // Predicated region
    $region33: #{bottleneck_forward.7} parent=5 // pred_check
      _
    $region34: #{bottleneck_forward.7} parent=5 // pred_check_branch
      %179 = sbr.rel (%p176) target = $region36
    $region35: #{bottleneck_forward.7} parent=5 // pred_region
      %s180 = ssub.s32 %s10, 1
      %s181 = smul.u32 16, %s15
      %p182 = scmp.lt.s32.totalorder %s181, 63
      %s183 = scalar_select %p182, %s181, 63
      %s184 = smul.addr %s183, 2
      %s185 = smul.addr %s184, 4
      %s186 = scalar_lea.vmem %s0, %s185
      %p187 = pneg %p36
      %p188 = pneg %p33
      %p189 = pneg %p57
      %p190 = pneg %p54
      %p191 = pneg %p78
      %p192 = pneg %p75
      %s193 = smul.u32 16, %s15
      %p194 = scmp.lt.s32.totalorder %s193, 63
      %s195 = scalar_select %p194, %s193, 63
      %s196 = smul.addr %s195, 8
      %s197 = scalar_lea.vmem %s3, %s196
      %p198 = pneg %p104
      %p199 = pneg %p101
      %p200 = pneg %p130
      %p201 = pneg %p127
      %s202 = smul.u32 16, %s15
      %p203 = scmp.lt.s32.totalorder %s202, 63
      %s204 = scalar_select %p203, %s202, 63
      %s205 = smul.addr %s204, 8
      %s206 = scalar_lea.vmem %s4, %s205
      %s207 = smul.u32 16, %s15
      %p208 = scmp.lt.s32.totalorder %s207, 63
      %s209 = scalar_select %p208, %s207, 63
      %s210 = smul.addr %s209, 2
      %s211 = smul.addr %s210, 4
      %s212 = scalar_lea.vmem %s0, %s211
      %s213 = smul.u32 16, %s15
      %s214 = smul.u32 16, %s15
      %p215 = scmp.lt.s32.totalorder %s214, 63
      %s216 = scalar_select %p215, %s214, 63
      %s217 = smul.addr %s216, 8
      %s218 = scalar_lea.vmem %s3, %s217
      %s219 = smul.u32 16, %s15
      %s220 = smul.u32 16, %s15
      %p221 = scmp.lt.s32.totalorder %s220, 63
      %s222 = scalar_select %p221, %s220, 63
      %s223 = smul.addr %s222, 8
      %s224 = scalar_lea.vmem %s4, %s223
      %s225 = smul.u32 16, %s15
      %v227 = vld [vmem:[%s212] sm:$0xff]
      %v228 = vld [vmem:[%s212 + $0x8] sm:$0xff]
      %v229 = vld [vmem:[%s212 + $0x10] sm:$0xff]
      %v230 = vld [vmem:[%s212 + $0x18] sm:$0xff]
      %v231 = vld [vmem:[%s212 + $0x20] sm:$0xff]
      %v232 = vld [vmem:[%s212 + $0x28] sm:$0xff]
      %v233 = vld [vmem:[%s212 + $0x30] sm:$0xff]
      %v234 = vld [vmem:[%s212 + $0x38] sm:$0xff]
      %v235 = vld [vmem:[%s212 + $0x40] sm:$0xff]
      %v236 = vld [vmem:[%s212 + $0x48] sm:$0xff]
      %v237 = vld [vmem:[%s212 + $0x50] sm:$0xff]
      %v238 = vld [vmem:[%s212 + $0x58] sm:$0xff]
      %v239 = vld [vmem:[%s212 + $0x60] sm:$0xff]
      %v240 = vld [vmem:[%s212 + $0x68] sm:$0xff]
      %v241 = vld [vmem:[%s212 + $0x70] sm:$0xff]
      %v242 = vld [vmem:[%s212 + $0x78] sm:$0xff]
      %v243 = vld [vmem:[%s1] sm:$0xf]
      %v244 = vld [vmem:[%s1 + $0x4] sm:$0xf]
      %v245 = vld [vmem:[%s1 + $0x8] sm:$0xf]
      %v246 = vld [vmem:[%s1 + $0xc] sm:$0xf]
      %v247 = vld [vmem:[%s1 + $0x10] sm:$0xf]
      %v248 = vld [vmem:[%s1 + $0x14] sm:$0xf]
      %v249 = vld [vmem:[%s1 + $0x18] sm:$0xf]
      %v250 = vld [vmem:[%s1 + $0x1c] sm:$0xf]
      %v251 = vld [vmem:[%s1 + $0x20] sm:$0xf]
      %v252 = vld [vmem:[%s1 + $0x24] sm:$0xf]
      %v253 = vld [vmem:[%s1 + $0x28] sm:$0xf]
      %v254 = vld [vmem:[%s1 + $0x2c] sm:$0xf]
      %v255 = vld [vmem:[%s1 + $0x30] sm:$0xf]
      %v256 = vld [vmem:[%s1 + $0x34] sm:$0xf]
      %v257 = vld [vmem:[%s1 + $0x38] sm:$0xf]
      %v258 = vld [vmem:[%s1 + $0x3c] sm:$0xf]
      %v259 = vld [vmem:[%s1 + $0x40] sm:$0xf]
      %v260 = vld [vmem:[%s1 + $0x44] sm:$0xf]
      %v261 = vld [vmem:[%s1 + $0x48] sm:$0xf]
      %v262 = vld [vmem:[%s1 + $0x4c] sm:$0xf]
      %v263 = vld [vmem:[%s1 + $0x50] sm:$0xf]
      %v264 = vld [vmem:[%s1 + $0x54] sm:$0xf]
      %v265 = vld [vmem:[%s1 + $0x58] sm:$0xf]
      %v266 = vld [vmem:[%s1 + $0x5c] sm:$0xf]
      %v267 = vld [vmem:[%s1 + $0x60] sm:$0xf]
      %v268 = vld [vmem:[%s1 + $0x64] sm:$0xf]
      %v269 = vld [vmem:[%s1 + $0x68] sm:$0xf]
      %v270 = vld [vmem:[%s1 + $0x6c] sm:$0xf]
      %v271 = vld [vmem:[%s1 + $0x70] sm:$0xf]
      %v272 = vld [vmem:[%s1 + $0x74] sm:$0xf]
      %v273 = vld [vmem:[%s1 + $0x78] sm:$0xf]
      %v274 = vld [vmem:[%s1 + $0x7c] sm:$0xf]
      %v275 = vld [vmem:[%s2] sm:$0x1]
      %v277 = vlaneseq
      %v278 = vshrl.u32 %v277, 7
      %v279 = vsub.s32 0, %v278
      %v280 = vrot.slane %v275, %v279
      %v298 = vunpack.c.l.b16 %v227
      %v299 = vunpack.c.h.b16 %v227
      %v300 = vunpack.c.l.b16 %v228
      %v301 = vunpack.c.h.b16 %v228
      %v302 = vunpack.c.l.b16 %v229
      %v303 = vunpack.c.h.b16 %v229
      %v304 = vunpack.c.l.b16 %v230
      %v305 = vunpack.c.h.b16 %v230
      %v306 = vunpack.c.l.b16 %v231
      %v307 = vunpack.c.h.b16 %v231
      %v308 = vunpack.c.l.b16 %v232
      %v309 = vunpack.c.h.b16 %v232
      %v310 = vunpack.c.l.b16 %v233
      %v311 = vunpack.c.h.b16 %v233
      %v312 = vunpack.c.l.b16 %v234
      %v313 = vunpack.c.h.b16 %v234
      %v314 = vunpack.c.l.b16 %v235
      %v315 = vunpack.c.h.b16 %v235
      %v316 = vunpack.c.l.b16 %v236
      %v317 = vunpack.c.h.b16 %v236
      %v318 = vunpack.c.l.b16 %v237
      %v319 = vunpack.c.h.b16 %v237
      %v320 = vunpack.c.l.b16 %v238
      %v321 = vunpack.c.h.b16 %v238
      %v322 = vunpack.c.l.b16 %v239
      %v323 = vunpack.c.h.b16 %v239
      %v324 = vunpack.c.l.b16 %v240
      %v325 = vunpack.c.h.b16 %v240
      %v326 = vunpack.c.l.b16 %v241
      %v327 = vunpack.c.h.b16 %v241
      %v328 = vunpack.c.l.b16 %v242
      %v329 = vunpack.c.h.b16 %v242
      %v330 = vpack.c.b16 %v300, %v298
      %v331 = vpack.c.b16 %v301, %v299
      %v332 = vpack.c.b16 %v304, %v302
      %v333 = vpack.c.b16 %v305, %v303
      %v334 = vpack.c.b16 %v308, %v306
      %v335 = vpack.c.b16 %v309, %v307
      %v336 = vpack.c.b16 %v312, %v310
      %v337 = vpack.c.b16 %v313, %v311
      %v338 = vpack.c.b16 %v316, %v314
      %v339 = vpack.c.b16 %v317, %v315
      %v340 = vpack.c.b16 %v320, %v318
      %v341 = vpack.c.b16 %v321, %v319
      %v342 = vpack.c.b16 %v324, %v322
      %v343 = vpack.c.b16 %v325, %v323
      %v344 = vpack.c.b16 %v328, %v326
      %v345 = vpack.c.b16 %v329, %v327
      %v394 = vunpack.c.l.b16 %v243
      %v395 = vunpack.c.l.b16 %v244
      %v396 = vunpack.c.l.b16 %v245
      %v397 = vunpack.c.l.b16 %v246
      %v398 = vunpack.c.l.b16 %v247
      %v399 = vunpack.c.l.b16 %v248
      %v400 = vunpack.c.l.b16 %v249
      %v401 = vunpack.c.l.b16 %v250
      %v402 = vunpack.c.l.b16 %v251
      %v403 = vunpack.c.l.b16 %v252
      %v404 = vunpack.c.l.b16 %v253
      %v405 = vunpack.c.l.b16 %v254
      %v406 = vunpack.c.l.b16 %v255
      %v407 = vunpack.c.l.b16 %v256
      %v408 = vunpack.c.l.b16 %v257
      %v409 = vunpack.c.l.b16 %v258
      %v410 = vunpack.c.l.b16 %v259
      %v411 = vunpack.c.l.b16 %v260
      %v412 = vunpack.c.l.b16 %v261
      %v413 = vunpack.c.l.b16 %v262
      %v414 = vunpack.c.l.b16 %v263
      %v415 = vunpack.c.l.b16 %v264
      %v416 = vunpack.c.l.b16 %v265
      %v417 = vunpack.c.l.b16 %v266
      %v418 = vunpack.c.l.b16 %v267
      %v419 = vunpack.c.l.b16 %v268
      %v420 = vunpack.c.l.b16 %v269
      %v421 = vunpack.c.l.b16 %v270
      %v422 = vunpack.c.l.b16 %v271
      %v423 = vunpack.c.l.b16 %v272
      %v424 = vunpack.c.l.b16 %v273
      %v425 = vunpack.c.l.b16 %v274
      %v426 = vpack.c.b16 %v395, %v394
      %v427 = vpack.c.b16 %v397, %v396
      %v428 = vpack.c.b16 %v399, %v398
      %v429 = vpack.c.b16 %v401, %v400
      %v430 = vpack.c.b16 %v403, %v402
      %v431 = vpack.c.b16 %v405, %v404
      %v432 = vpack.c.b16 %v407, %v406
      %v433 = vpack.c.b16 %v409, %v408
      %v434 = vpack.c.b16 %v411, %v410
      %v435 = vpack.c.b16 %v413, %v412
      %v436 = vpack.c.b16 %v415, %v414
      %v437 = vpack.c.b16 %v417, %v416
      %v438 = vpack.c.b16 %v419, %v418
      %v439 = vpack.c.b16 %v421, %v420
      %v440 = vpack.c.b16 %v423, %v422
      %v441 = vpack.c.b16 %v425, %v424
      %458 = vmatprep.subr.bf16.mxu0 0
      %459 = vmatpush1.bf16.msra.mxu0 %v433
      %460 = vmatprep.subr.bf16.mxu0 0
      %461 = vmatpush1.bf16.msra.mxu0 %v432
      %462 = vmatprep.subr.bf16.mxu0 0
      %463 = vmatpush1.bf16.msra.mxu0 %v431
      %464 = vmatprep.subr.bf16.mxu0 0
      %465 = vmatpush1.bf16.msra.mxu0 %v430
      %466 = vmatprep.subr.bf16.mxu0 0
      %467 = vmatpush1.bf16.msra.mxu0 %v429
      %468 = vmatprep.subr.bf16.mxu0 0
      %469 = vmatpush1.bf16.msra.mxu0 %v428
      %470 = vmatprep.subr.bf16.mxu0 0
      %471 = vmatpush1.bf16.msra.mxu0 %v427
      %472 = vmatprep.subr.bf16.mxu0 0
      %473 = vmatpush1.bf16.msra.mxu0 %v426
      %474 = vmatprep.subr.bf16.mxu0 0
      %475 = vmatpush2.bf16.msra.mxu0 %v441
      %476 = vmatprep.subr.bf16.mxu0 0
      %477 = vmatpush2.bf16.msra.mxu0 %v440
      %478 = vmatprep.subr.bf16.mxu0 0
      %479 = vmatpush2.bf16.msra.mxu0 %v439
      %480 = vmatprep.subr.bf16.mxu0 0
      %481 = vmatpush2.bf16.msra.mxu0 %v438
      %482 = vmatprep.subr.bf16.mxu0 0
      %483 = vmatpush2.bf16.msra.mxu0 %v437
      %484 = vmatprep.subr.bf16.mxu0 0
      %485 = vmatpush2.bf16.msra.mxu0 %v436
      %486 = vmatprep.subr.bf16.mxu0 0
      %487 = vmatpush2.bf16.msra.mxu0 %v435
      %488 = vmatprep.subr.bf16.mxu0 0
      %489 = vmatpush2.bf16.msra.mxu0 %v434
      %490 = vmatprep.mubr.bf16.mxu0 %v331
      %491 = vmatmul.mubr.bf16.gmra.mxu0 %v330
      %v492 = vpop.f32.mrf.mxu0
      %v493 = vadd.f32 %v280, %v492
      %v494 = vpop.f32.mrf.mxu0
      %v495 = vpop.f32.mrf.mxu0
      %v496 = vadd.f32 %v280, %v495
      %v497 = vpop.f32.mrf.mxu0
      %498 = vmatprep.mubr.bf16.mxu0 %v333
      %499 = vmatmul.mubr.bf16.gmra.mxu0 %v332
      %v500 = vpop.f32.mrf.mxu0
      %v501 = vadd.f32 %v280, %v500
      %v502 = vpop.f32.mrf.mxu0
      %v503 = vpop.f32.mrf.mxu0
      %v504 = vadd.f32 %v280, %v503
      %v505 = vpop.f32.mrf.mxu0
      %506 = vmatprep.mubr.bf16.mxu0 %v335
      %507 = vmatmul.mubr.bf16.gmra.mxu0 %v334
      %v508 = vpop.f32.mrf.mxu0
      %v509 = vadd.f32 %v280, %v508
      %v510 = vpop.f32.mrf.mxu0
      %v511 = vpop.f32.mrf.mxu0
      %v512 = vadd.f32 %v280, %v511
      %v513 = vpop.f32.mrf.mxu0
      %514 = vmatprep.mubr.bf16.mxu0 %v337
      %515 = vmatmul.mubr.bf16.gmra.mxu0 %v336
      %v516 = vpop.f32.mrf.mxu0
      %v517 = vadd.f32 %v280, %v516
      %v518 = vpop.f32.mrf.mxu0
      %v519 = vpop.f32.mrf.mxu0
      %v520 = vadd.f32 %v280, %v519
      %v521 = vpop.f32.mrf.mxu0
      %522 = vmatprep.mubr.bf16.mxu0 %v339
      %523 = vmatmul.mubr.bf16.gmra.mxu0 %v338
      %v524 = vpop.f32.mrf.mxu0
      %v525 = vadd.f32 %v280, %v524
      %v526 = vpop.f32.mrf.mxu0
      %v527 = vpop.f32.mrf.mxu0
      %v528 = vadd.f32 %v280, %v527
      %v529 = vpop.f32.mrf.mxu0
      %530 = vmatprep.mubr.bf16.mxu0 %v341
      %531 = vmatmul.mubr.bf16.gmra.mxu0 %v340
      %v532 = vpop.f32.mrf.mxu0
      %v533 = vadd.f32 %v280, %v532
      %v534 = vpop.f32.mrf.mxu0
      %v535 = vpop.f32.mrf.mxu0
      %v536 = vadd.f32 %v280, %v535
      %v537 = vpop.f32.mrf.mxu0
      %538 = vmatprep.mubr.bf16.mxu0 %v343
      %539 = vmatmul.mubr.bf16.gmra.mxu0 %v342
      %v540 = vpop.f32.mrf.mxu0
      %v541 = vadd.f32 %v280, %v540
      %v542 = vpop.f32.mrf.mxu0
      %v543 = vpop.f32.mrf.mxu0
      %v544 = vadd.f32 %v280, %v543
      %v545 = vpop.f32.mrf.mxu0
      %546 = vmatprep.mubr.bf16.mxu0 %v345
      %547 = vmatmul.mubr.bf16.gmra.mxu0 %v344
      %v548 = vpop.f32.mrf.mxu0
      %v549 = vadd.f32 %v280, %v548
      %v550 = vpop.f32.mrf.mxu0
      %v551 = vpop.f32.mrf.mxu0
      %v552 = vadd.f32 %v280, %v551
      %v553 = vpop.f32.mrf.mxu0
      %554 = vdwg.mxu0
      %v555 = vld [vmem:[%s218] sm:$0xff]
      %v556 = vld [vmem:[%s218 + $0x8] sm:$0xff]
      %v557 = vld [vmem:[%s218 + $0x10] sm:$0xff]
      %v558 = vld [vmem:[%s218 + $0x18] sm:$0xff]
      %v559 = vld [vmem:[%s218 + $0x20] sm:$0xff]
      %v560 = vld [vmem:[%s218 + $0x28] sm:$0xff]
      %v561 = vld [vmem:[%s218 + $0x30] sm:$0xff]
      %v562 = vld [vmem:[%s218 + $0x38] sm:$0xff]
      %v563 = vld [vmem:[%s218 + $0x40] sm:$0xff]
      %v564 = vld [vmem:[%s218 + $0x48] sm:$0xff]
      %v565 = vld [vmem:[%s218 + $0x50] sm:$0xff]
      %v566 = vld [vmem:[%s218 + $0x58] sm:$0xff]
      %v567 = vld [vmem:[%s218 + $0x60] sm:$0xff]
      %v568 = vld [vmem:[%s218 + $0x68] sm:$0xff]
      %v569 = vld [vmem:[%s218 + $0x70] sm:$0xff]
      %v570 = vld [vmem:[%s218 + $0x78] sm:$0xff]
      %v571 = vadd.f32 %v493, %v555
      %v572 = vadd.f32 %v496, %v556
      %v573 = vadd.f32 %v501, %v557
      %v574 = vadd.f32 %v504, %v558
      %v575 = vadd.f32 %v509, %v559
      %v576 = vadd.f32 %v512, %v560
      %v577 = vadd.f32 %v517, %v561
      %v578 = vadd.f32 %v520, %v562
      %v579 = vadd.f32 %v525, %v563
      %v580 = vadd.f32 %v528, %v564
      %v581 = vadd.f32 %v533, %v565
      %v582 = vadd.f32 %v536, %v566
      %v583 = vadd.f32 %v541, %v567
      %v584 = vadd.f32 %v544, %v568
      %v585 = vadd.f32 %v549, %v569
      %v586 = vadd.f32 %v552, %v570
      %v587 = vmax.f32 %v571, 0.0
      %v588 = vmax.f32 %v572, 0.0
      %v589 = vmax.f32 %v573, 0.0
      %v590 = vmax.f32 %v574, 0.0
      %v591 = vmax.f32 %v575, 0.0
      %v592 = vmax.f32 %v576, 0.0
      %v593 = vmax.f32 %v577, 0.0
      %v594 = vmax.f32 %v578, 0.0
      %v595 = vmax.f32 %v579, 0.0
      %v596 = vmax.f32 %v580, 0.0
      %v597 = vmax.f32 %v581, 0.0
      %v598 = vmax.f32 %v582, 0.0
      %v599 = vmax.f32 %v583, 0.0
      %v600 = vmax.f32 %v584, 0.0
      %v601 = vmax.f32 %v585, 0.0
      %v602 = vmax.f32 %v586, 0.0
      %603 = vst [vmem:[%s224] sm:$0xff] %v587
      %604 = vst [vmem:[%s224 + $0x8] sm:$0xff] %v588
      %605 = vst [vmem:[%s224 + $0x10] sm:$0xff] %v589
      %606 = vst [vmem:[%s224 + $0x18] sm:$0xff] %v590
      %607 = vst [vmem:[%s224 + $0x20] sm:$0xff] %v591
      %608 = vst [vmem:[%s224 + $0x28] sm:$0xff] %v592
      %609 = vst [vmem:[%s224 + $0x30] sm:$0xff] %v593
      %610 = vst [vmem:[%s224 + $0x38] sm:$0xff] %v594
      %611 = vst [vmem:[%s224 + $0x40] sm:$0xff] %v595
      %612 = vst [vmem:[%s224 + $0x48] sm:$0xff] %v596
      %613 = vst [vmem:[%s224 + $0x50] sm:$0xff] %v597
      %614 = vst [vmem:[%s224 + $0x58] sm:$0xff] %v598
      %615 = vst [vmem:[%s224 + $0x60] sm:$0xff] %v599
      %616 = vst [vmem:[%s224 + $0x68] sm:$0xff] %v600
      %617 = vst [vmem:[%s224 + $0x70] sm:$0xff] %v601
      %618 = vst [vmem:[%s224 + $0x78] sm:$0xff] %v602
      %s619 = smul.u32 16, %s15
      %p620 = scmp.lt.s32.totalorder %s619, 63
      %s621 = scalar_select %p620, %s619, 63
      %s622 = smul.addr %s621, 8
      %s623 = scalar_lea.vmem %s4, %s622
      // Predicated region
      $region37: #{bottleneck_forward.7} parent=35 // pred_check
        %p624 = pneg %p127
      $region38: #{bottleneck_forward.7} parent=35 // pred_check_branch
        %626 = sbr.rel (%p624) target = $region40
      $region39: #{bottleneck_forward.7} parent=35 // pred_region
        %s627 = smul.u32 16, %s15
      $region40: #{bottleneck_forward.7} parent=35 // pred_fallthru
        _
    $region36: #{bottleneck_forward.7} parent=5 // pred_fallthru
      _
    %p628 = scmp.le.s32.totalorder 2, %s10
    // Predicated region
    $region41: #{bottleneck_forward.7} parent=5 // pred_check
      %p629 = pneg %p628
    $region42: #{bottleneck_forward.7} parent=5 // pred_check_branch
      %631 = sbr.rel (%p629) target = $region44
    $region43: #{bottleneck_forward.7} parent=5 // pred_region
      %s632 = ssub.s32 %s10, 2
      // Predicated region
      $region45: #{bottleneck_forward.7} parent=43 // pred_check
        %p633 = pneg %p133
      $region46: #{bottleneck_forward.7} parent=43 // pred_check_branch
        %635 = sbr.rel (%p633) target = $region48
      $region47: #{bottleneck_forward.7} parent=43 // pred_region
        %s636 = smul.u32 16, %s16
        %p637 = scmp.lt.s32.totalorder %s636, 63
        %s638 = scalar_select %p637, %s636, 63
        %s639 = smul.addr %s638, 8
        %s640 = scalar_lea.vmem %s4, %s639
      $region48: #{bottleneck_forward.7} parent=43 // pred_fallthru
        _
    $region44: #{bottleneck_forward.7} parent=5 // pred_fallthru
      _
  $region6: #{bottleneck_forward.7} parent=0 // loop_footer
    %s14 = sadd.s32 1, %s10
  $region7: #{bottleneck_forward.7} parent=0 // loop_footer_branch
    %9 = sbr.rel target = $region3
  $region8: #{bottleneck_forward.7} parent=0 // loop_exit
    _

</llo_original>
